<compile_context>
chip_gen: v7x
topology: tpu7x:2x2x1
jax: 0.10.0
libtpu: 0.0.40
codegen_flags: <defaults>
</compile_context>

<pallas_src>
import functools

import jax
import jax.numpy as jnp
from jax import lax
from jax.experimental import pallas as pl
from jax.experimental.pallas import tpu as pltpu


def bilstm_kernel(emb_ref,                       # (S*Bp, E)
                  wih_ref,                       # (E, 8H)   [fwd 4H | bwd 4H]
                  bin_ref,                       # (1, 8H)   fused bih+bhh, both dirs
                  whh_f_ref, whh_b_ref,          # (H, 4H) each
                  wlin_f_ref, wlin_b_ref,        # (H, Lp) each
                  blin_ref,                      # (1, Lp)
                  out_ref,                       # (S*Bp, Lp)
                  gin_scr,                       # scratch (S*Bp, 8H)
                  hf_scr, hb_scr,                # scratch (S*Bp, H) each
                  *, S, Bp):
    H = whh_f_ref.shape[0]

    # ---- single big MXU pass: input projection for both directions + biases ----
    gin_scr[...] = (jnp.dot(emb_ref[...], wih_ref[...],
                            preferred_element_type=jnp.float32)
                    + bin_ref[...])

    whh_f = whh_f_ref[...]
    whh_b = whh_b_ref[...]

    def cell(gin, h, c, whh):
        # gates: (Bp, 4H), PyTorch gate order i, f, g, o
        gates = gin + jnp.dot(h, whh, preferred_element_type=jnp.float32)
        i = jax.nn.sigmoid(gates[:, 0 * H:1 * H])
        f = jax.nn.sigmoid(gates[:, 1 * H:2 * H])
        g = jnp.tanh(gates[:, 2 * H:3 * H])
        o = jax.nn.sigmoid(gates[:, 3 * H:4 * H])
        c_new = f * c + i * g
        h_new = o * jnp.tanh(c_new)
        return h_new, c_new

    zeros = jnp.zeros((Bp, H), jnp.float32)

    # ---- interleaved forward (t = s) and backward (t = S-1-s) recurrence ----
    def body(s, carry):
        hf, cf, hb, cb = carry
        rf = pl.multiple_of(s * Bp, Bp)
        rb = pl.multiple_of((S - 1 - s) * Bp, Bp)
        gin_f = gin_scr[pl.ds(rf, Bp), 0 * H:4 * H]
        gin_b = gin_scr[pl.ds(rb, Bp), 4 * H:8 * H]
        hf, cf = cell(gin_f, hf, cf, whh_f)
        hb, cb = cell(gin_b, hb, cb, whh_b)
        hf_scr[pl.ds(rf, Bp), :] = hf
        hb_scr[pl.ds(rb, Bp), :] = hb
        return hf, cf, hb, cb

    lax.fori_loop(0, S, body, (zeros, zeros, zeros, zeros), unroll=True)

    # ---- final linear: no concat; two matmuls into the same f32 accumulator ----
    out_ref[...] = (jnp.dot(hf_scr[...], wlin_f_ref[...],
                            preferred_element_type=jnp.float32)
                    + jnp.dot(hb_scr[...], wlin_b_ref[...],
                              preferred_element_type=jnp.float32)
                    + blin_ref[...])


def bilstm_forward(tokens, attention_mask, target, params):
    """tokens: (S, B) int32. attention_mask/target are unused (as in the torch forward)."""
    del attention_mask, target
    S, B = tokens.shape
    emb_table = params["embedding"]                      # (V, E)
    E = emb_table.shape[1]
    H = params["whh_f"].shape[1]
    L = params["wlin"].shape[0]

    Bp = ((B + 7) // 8) * 8                              # sublane-pad batch
    Lp = ((L + 127) // 128) * 128                        # lane-pad labels

    # Embedding lookup (gather) stays in plain JAX glue.
    emb = jnp.take(emb_table, tokens.reshape(-1), axis=0).reshape(S, B, E)
    emb_p = jnp.pad(emb, ((0, 0), (0, Bp - B), (0, 0)))
    emb_flat = emb_p.reshape(S * Bp, E)

    # Combined input-projection weight for both directions, biases pre-fused.
    wih_cat = jnp.concatenate([params["wih_f"].T, params["wih_b"].T], axis=1)   # (E, 8H)
    b_cat = jnp.concatenate([params["bih_f"] + params["bhh_f"],
                             params["bih_b"] + params["bhh_b"]]).reshape(1, 8 * H)
    whh_f_T = params["whh_f"].T                          # (H, 4H)
    whh_b_T = params["whh_b"].T                          # (H, 4H)
    wlin_T = params["wlin"].T                            # (2H, L)
    wlin_f = jnp.pad(wlin_T[:H], ((0, 0), (0, Lp - L)))  # (H, Lp)
    wlin_b = jnp.pad(wlin_T[H:], ((0, 0), (0, Lp - L)))  # (H, Lp)
    blin = jnp.pad(params["blin"], (0, Lp - L)).reshape(1, Lp)

    kernel = functools.partial(bilstm_kernel, S=S, Bp=Bp)

    vmem = pl.BlockSpec(memory_space=pltpu.MemorySpace.VMEM)
    out_padded = pl.pallas_call(
        kernel,
        out_shape=jax.ShapeDtypeStruct((S * Bp, Lp), jnp.float32),
        in_specs=[vmem] * 8,
        out_specs=vmem,
        scratch_shapes=[pltpu.VMEM((S * Bp, 8 * H), jnp.float32),
                        pltpu.VMEM((S * Bp, H), jnp.float32),
                        pltpu.VMEM((S * Bp, H), jnp.float32)],
    )(emb_flat, wih_cat, b_cat, whh_f_T, whh_b_T, wlin_f, wlin_b, blin)

    # Strip padding -> (S, B, L) logits, then apply the torch view quirk:
    # logits.view(len(input), labels_size, -1) is a raw memory reinterpretation.
    logits = out_padded.reshape(S, Bp, Lp)[:, :B, :L]
    return logits.reshape(S, L, B)


# ---------------- pure-JAX reference (for correctness check) ----------------
def _ref_forward(tokens, params):
    S, B = tokens.shape
    emb_table = params["embedding"]
    E = emb_table.shape[1]
    H = params["whh_f"].shape[1]
    L = params["wlin"].shape[0]
    emb = jnp.take(emb_table, tokens.reshape(-1), axis=0).reshape(S, B, E)

    def run_dir(wih, whh, bih, bhh, reverse):
        b = bih + bhh
        ts = range(S - 1, -1, -1) if reverse else range(S)
        h = jnp.zeros((B, H), jnp.float32)
        c = jnp.zeros((B, H), jnp.float32)
        outs = [None] * S
        for t in ts:
            gates = emb[t] @ wih.T + h @ whh.T + b
            i = jax.nn.sigmoid(gates[:, 0 * H:1 * H])
            f = jax.nn.sigmoid(gates[:, 1 * H:2 * H])
            g = jnp.tanh(gates[:, 2 * H:3 * H])
            o = jax.nn.sigmoid(gates[:, 3 * H:4 * H])
            c = f * c + i * g
            h = o * jnp.tanh(c)
            outs[t] = h
        return jnp.stack(outs, axis=0)                   # (S, B, H)

    hf = run_dir(params["wih_f"], params["whh_f"], params["bih_f"], params["bhh_f"], False)
    hb = run_dir(params["wih_b"], params["whh_b"], params["bih_b"], params["bhh_b"], True)
    out_lstm = jnp.concatenate([hf, hb], axis=-1)        # (S, B, 2H)
    logits = out_lstm @ params["wlin"].T + params["blin"]
    return logits.reshape(S, L, B)


def init_params(key, vocab_size, embedding_dim, hidden_dim, labels_size):
    E, H, L = embedding_dim, hidden_dim, labels_size
    ks = jax.random.split(key, 11)
    u = lambda k, shape, s: jax.random.uniform(k, shape, jnp.float32, -s, s)
    return {
        "embedding": jax.random.normal(ks[0], (vocab_size, E), jnp.float32),
        "wih_f": u(ks[1], (4 * H, E), 0.1),
        "whh_f": u(ks[2], (4 * H, H), 0.1),
        "bih_f": u(ks[3], (4 * H,), 0.1),
        "bhh_f": u(ks[4], (4 * H,), 0.1),
        "wih_b": u(ks[5], (4 * H, E), 0.1),
        "whh_b": u(ks[6], (4 * H, H), 0.1),
        "bih_b": u(ks[7], (4 * H,), 0.1),
        "bhh_b": u(ks[8], (4 * H,), 0.1),
        "wlin": u(ks[9], (L, 2 * H), 0.1),
        "blin": u(ks[10], (L,), 0.1),
    }


if __name__ == "__main__":
    S, B = 8, 2                 # seq-first: len(input) == S, matching nn.LSTM default
    VOCAB, E, H, L = 50, 16, 32, 5

    key = jax.random.PRNGKey(0)
    k_tok, k_par = jax.random.split(key)
    tokens = jax.random.randint(k_tok, (S, B), 0, VOCAB, dtype=jnp.int32)
    attention_mask = jnp.ones((S, B), jnp.int32)   # unused by forward (kept for signature parity)
    target = jnp.zeros((S, B), jnp.int32)          # unused by forward
    params = init_params(k_par, VOCAB, E, H, L)

    out = bilstm_forward(tokens, attention_mask, target, params)
    out = jax.block_until_ready(out)

    ref = _ref_forward(tokens, params)
    assert out.shape == (S, L, B), out.shape
    assert jnp.allclose(out, ref, atol=1e-4, rtol=1e-4), "mismatch vs reference"
    print("KERNEL_OK")
</pallas_src>

<mosaic_0001>
module attributes {stable_mosaic.version = 11 : i64} {
  func.func @bilstm_kernel(%arg0: memref<64x16xf32, #tpu.memory_space<vmem>>, %arg1: memref<16x256xf32, #tpu.memory_space<vmem>>, %arg2: memref<1x256xf32, #tpu.memory_space<vmem>>, %arg3: memref<32x128xf32, #tpu.memory_space<vmem>>, %arg4: memref<32x128xf32, #tpu.memory_space<vmem>>, %arg5: memref<32x128xf32, #tpu.memory_space<vmem>>, %arg6: memref<32x128xf32, #tpu.memory_space<vmem>>, %arg7: memref<1x128xf32, #tpu.memory_space<vmem>>, %arg8: memref<64x128xf32, #tpu.memory_space<vmem>>, %arg9: memref<64x256xf32, #tpu.memory_space<vmem>>, %arg10: memref<64x32xf32, #tpu.memory_space<vmem>>, %arg11: memref<64x32xf32, #tpu.memory_space<vmem>>) attributes {dimension_semantics = [], scalar_prefetch = 0 : i64, scratch_operands = 3 : i64, tpu.core_type = #tpu.core_type<tc>} {
    %c0 = arith.constant 0 : index
    %c0_0 = arith.constant 0 : index
    %0 = vector.load %arg0[%c0, %c0_0] : memref<64x16xf32, #tpu.memory_space<vmem>>, vector<64x16xf32>
    %c0_1 = arith.constant 0 : index
    %c0_2 = arith.constant 0 : index
    %1 = vector.load %arg1[%c0_1, %c0_2] : memref<16x256xf32, #tpu.memory_space<vmem>>, vector<16x256xf32>
    %cst = arith.constant dense<0.000000e+00> : vector<64x256xf32>
    %2 = tpu.matmul %0, %1, %cst {dimension_numbers = #tpu.dot_dimension_numbers<[1], [0], [0], [1], [0, 0, 1, 1], [], []>} : vector<64x16xf32>, vector<16x256xf32>, vector<64x256xf32> -> vector<64x256xf32>
    %c0_3 = arith.constant 0 : index
    %c0_4 = arith.constant 0 : index
    %3 = vector.load %arg2[%c0_3, %c0_4] : memref<1x256xf32, #tpu.memory_space<vmem>>, vector<1x256xf32>
    %4 = vector.broadcast %3 : vector<1x256xf32> to vector<64x256xf32>
    %5 = arith.addf %2, %4 : vector<64x256xf32>
    %c0_5 = arith.constant 0 : index
    %c0_6 = arith.constant 0 : index
    %6 = vector.load %arg9[%c0_5, %c0_6] : memref<64x256xf32, #tpu.memory_space<vmem>>, vector<64x256xf32>
    tpu.vector_store %arg9[%c0_5, %c0_6], %5 {strides = array<i32>} : memref<64x256xf32, #tpu.memory_space<vmem>>, vector<64x256xf32>,
    %c0_7 = arith.constant 0 : index
    %c0_8 = arith.constant 0 : index
    %7 = vector.load %arg3[%c0_7, %c0_8] : memref<32x128xf32, #tpu.memory_space<vmem>>, vector<32x128xf32>
    %c0_9 = arith.constant 0 : index
    %c0_10 = arith.constant 0 : index
    %8 = vector.load %arg4[%c0_9, %c0_10] : memref<32x128xf32, #tpu.memory_space<vmem>>, vector<32x128xf32>
    %cst_11 = arith.constant 0.000000e+00 : f32
    %9 = vector.broadcast %cst_11 : f32 to vector<8x32xf32>
    %c0_i32 = arith.constant 0 : i32
    %c8_i32 = arith.constant 8 : i32
    %10 = arith.muli %c0_i32, %c8_i32 : i32
    %11 = tpu.assume_multiple %10, 8 : i32
    %c7_i32 = arith.constant 7 : i32
    %12 = arith.subi %c7_i32, %c0_i32 : i32
    %c8_i32_12 = arith.constant 8 : i32
    %13 = arith.muli %12, %c8_i32_12 : i32
    %14 = tpu.assume_multiple %13, 8 : i32
    %15 = arith.index_cast %11 : i32 to index
    %c0_13 = arith.constant 0 : index
    %16 = vector.load %arg9[%15, %c0_13] : memref<64x256xf32, #tpu.memory_space<vmem>>, vector<8x128xf32>
    %17 = arith.index_cast %14 : i32 to index
    %c128 = arith.constant 128 : index
    %18 = vector.load %arg9[%17, %c128] : memref<64x256xf32, #tpu.memory_space<vmem>>, vector<8x128xf32>
    %cst_14 = arith.constant dense<0.000000e+00> : vector<8x128xf32>
    %19 = tpu.matmul %9, %7, %cst_14 {dimension_numbers = #tpu.dot_dimension_numbers<[1], [0], [0], [1], [0, 0, 1, 1], [], []>} : vector<8x32xf32>, vector<32x128xf32>, vector<8x128xf32> -> vector<8x128xf32>
    %20 = arith.addf %16, %19 : vector<8x128xf32>
    %21 = vector.extract_strided_slice %20 {offsets = [0, 0], sizes = [8, 32], strides = [1, 1]} : vector<8x128xf32> to vector<8x32xf32>
    %22 = arith.negf %21 : vector<8x32xf32>
    %23 = math.exp %22 : vector<8x32xf32>
    %cst_15 = arith.constant 1.000000e+00 : f32
    %24 = vector.broadcast %cst_15 : f32 to vector<8x32xf32>
    %25 = arith.addf %24, %23 : vector<8x32xf32>
    %26 = arith.divf %24, %25 : vector<8x32xf32>
    %27 = vector.extract_strided_slice %20 {offsets = [0, 32], sizes = [8, 32], strides = [1, 1]} : vector<8x128xf32> to vector<8x32xf32>
    %28 = arith.negf %27 : vector<8x32xf32>
    %29 = math.exp %28 : vector<8x32xf32>
    %cst_16 = arith.constant 1.000000e+00 : f32
    %30 = vector.broadcast %cst_16 : f32 to vector<8x32xf32>
    %31 = arith.addf %30, %29 : vector<8x32xf32>
    %32 = arith.divf %30, %31 : vector<8x32xf32>
    %33 = vector.extract_strided_slice %20 {offsets = [0, 64], sizes = [8, 32], strides = [1, 1]} : vector<8x128xf32> to vector<8x32xf32>
    %34 = math.tanh %33 : vector<8x32xf32>
    %35 = vector.extract_strided_slice %20 {offsets = [0, 96], sizes = [8, 32], strides = [1, 1]} : vector<8x128xf32> to vector<8x32xf32>
    %36 = arith.negf %35 : vector<8x32xf32>
    %37 = math.exp %36 : vector<8x32xf32>
    %cst_17 = arith.constant 1.000000e+00 : f32
    %38 = vector.broadcast %cst_17 : f32 to vector<8x32xf32>
    %39 = arith.addf %38, %37 : vector<8x32xf32>
    %40 = arith.divf %38, %39 : vector<8x32xf32>
    %41 = arith.mulf %32, %9 : vector<8x32xf32>
    %42 = arith.mulf %26, %34 : vector<8x32xf32>
    %43 = arith.addf %41, %42 : vector<8x32xf32>
    %44 = math.tanh %43 : vector<8x32xf32>
    %45 = arith.mulf %40, %44 : vector<8x32xf32>
    %cst_18 = arith.constant dense<0.000000e+00> : vector<8x128xf32>
    %46 = tpu.matmul %9, %8, %cst_18 {dimension_numbers = #tpu.dot_dimension_numbers<[1], [0], [0], [1], [0, 0, 1, 1], [], []>} : vector<8x32xf32>, vector<32x128xf32>, vector<8x128xf32> -> vector<8x128xf32>
    %47 = arith.addf %18, %46 : vector<8x128xf32>
    %48 = vector.extract_strided_slice %47 {offsets = [0, 0], sizes = [8, 32], strides = [1, 1]} : vector<8x128xf32> to vector<8x32xf32>
    %49 = arith.negf %48 : vector<8x32xf32>
    %50 = math.exp %49 : vector<8x32xf32>
    %cst_19 = arith.constant 1.000000e+00 : f32
    %51 = vector.broadcast %cst_19 : f32 to vector<8x32xf32>
    %52 = arith.addf %51, %50 : vector<8x32xf32>
    %53 = arith.divf %51, %52 : vector<8x32xf32>
    %54 = vector.extract_strided_slice %47 {offsets = [0, 32], sizes = [8, 32], strides = [1, 1]} : vector<8x128xf32> to vector<8x32xf32>
    %55 = arith.negf %54 : vector<8x32xf32>
    %56 = math.exp %55 : vector<8x32xf32>
    %cst_20 = arith.constant 1.000000e+00 : f32
    %57 = vector.broadcast %cst_20 : f32 to vector<8x32xf32>
    %58 = arith.addf %57, %56 : vector<8x32xf32>
    %59 = arith.divf %57, %58 : vector<8x32xf32>
    %60 = vector.extract_strided_slice %47 {offsets = [0, 64], sizes = [8, 32], strides = [1, 1]} : vector<8x128xf32> to vector<8x32xf32>
    %61 = math.tanh %60 : vector<8x32xf32>
    %62 = vector.extract_strided_slice %47 {offsets = [0, 96], sizes = [8, 32], strides = [1, 1]} : vector<8x128xf32> to vector<8x32xf32>
    %63 = arith.negf %62 : vector<8x32xf32>
    %64 = math.exp %63 : vector<8x32xf32>
    %cst_21 = arith.constant 1.000000e+00 : f32
    %65 = vector.broadcast %cst_21 : f32 to vector<8x32xf32>
    %66 = arith.addf %65, %64 : vector<8x32xf32>
    %67 = arith.divf %65, %66 : vector<8x32xf32>
    %68 = arith.mulf %59, %9 : vector<8x32xf32>
    %69 = arith.mulf %53, %61 : vector<8x32xf32>
    %70 = arith.addf %68, %69 : vector<8x32xf32>
    %71 = math.tanh %70 : vector<8x32xf32>
    %72 = arith.mulf %67, %71 : vector<8x32xf32>
    %73 = arith.index_cast %11 : i32 to index
    %c0_22 = arith.constant 0 : index
    %74 = vector.load %arg10[%73, %c0_22] : memref<64x32xf32, #tpu.memory_space<vmem>>, vector<8x32xf32>
    tpu.vector_store %arg10[%73, %c0_22], %45 {strides = array<i32>} : memref<64x32xf32, #tpu.memory_space<vmem>>, vector<8x32xf32>,
    %75 = arith.index_cast %14 : i32 to index
    %c0_23 = arith.constant 0 : index
    %76 = vector.load %arg11[%75, %c0_23] : memref<64x32xf32, #tpu.memory_space<vmem>>, vector<8x32xf32>
    tpu.vector_store %arg11[%75, %c0_23], %72 {strides = array<i32>} : memref<64x32xf32, #tpu.memory_space<vmem>>, vector<8x32xf32>,
    %c1_i32 = arith.constant 1 : i32
    %c8_i32_24 = arith.constant 8 : i32
    %77 = arith.muli %c1_i32, %c8_i32_24 : i32
    %78 = tpu.assume_multiple %77, 8 : i32
    %c7_i32_25 = arith.constant 7 : i32
    %79 = arith.subi %c7_i32_25, %c1_i32 : i32
    %c8_i32_26 = arith.constant 8 : i32
    %80 = arith.muli %79, %c8_i32_26 : i32
    %81 = tpu.assume_multiple %80, 8 : i32
    %82 = arith.index_cast %78 : i32 to index
    %c0_27 = arith.constant 0 : index
    %83 = vector.load %arg9[%82, %c0_27] : memref<64x256xf32, #tpu.memory_space<vmem>>, vector<8x128xf32>
    %84 = arith.index_cast %81 : i32 to index
    %c128_28 = arith.constant 128 : index
    %85 = vector.load %arg9[%84, %c128_28] : memref<64x256xf32, #tpu.memory_space<vmem>>, vector<8x128xf32>
    %cst_29 = arith.constant dense<0.000000e+00> : vector<8x128xf32>
    %86 = tpu.matmul %45, %7, %cst_29 {dimension_numbers = #tpu.dot_dimension_numbers<[1], [0], [0], [1], [0, 0, 1, 1], [], []>} : vector<8x32xf32>, vector<32x128xf32>, vector<8x128xf32> -> vector<8x128xf32>
    %87 = arith.addf %83, %86 : vector<8x128xf32>
    %88 = vector.extract_strided_slice %87 {offsets = [0, 0], sizes = [8, 32], strides = [1, 1]} : vector<8x128xf32> to vector<8x32xf32>
    %89 = arith.negf %88 : vector<8x32xf32>
    %90 = math.exp %89 : vector<8x32xf32>
    %cst_30 = arith.constant 1.000000e+00 : f32
    %91 = vector.broadcast %cst_30 : f32 to vector<8x32xf32>
    %92 = arith.addf %91, %90 : vector<8x32xf32>
    %93 = arith.divf %91, %92 : vector<8x32xf32>
    %94 = vector.extract_strided_slice %87 {offsets = [0, 32], sizes = [8, 32], strides = [1, 1]} : vector<8x128xf32> to vector<8x32xf32>
    %95 = arith.negf %94 : vector<8x32xf32>
    %96 = math.exp %95 : vector<8x32xf32>
    %cst_31 = arith.constant 1.000000e+00 : f32
    %97 = vector.broadcast %cst_31 : f32 to vector<8x32xf32>
    %98 = arith.addf %97, %96 : vector<8x32xf32>
    %99 = arith.divf %97, %98 : vector<8x32xf32>
    %100 = vector.extract_strided_slice %87 {offsets = [0, 64], sizes = [8, 32], strides = [1, 1]} : vector<8x128xf32> to vector<8x32xf32>
    %101 = math.tanh %100 : vector<8x32xf32>
    %102 = vector.extract_strided_slice %87 {offsets = [0, 96], sizes = [8, 32], strides = [1, 1]} : vector<8x128xf32> to vector<8x32xf32>
    %103 = arith.negf %102 : vector<8x32xf32>
    %104 = math.exp %103 : vector<8x32xf32>
    %cst_32 = arith.constant 1.000000e+00 : f32
    %105 = vector.broadcast %cst_32 : f32 to vector<8x32xf32>
    %106 = arith.addf %105, %104 : vector<8x32xf32>
    %107 = arith.divf %105, %106 : vector<8x32xf32>
    %108 = arith.mulf %99, %43 : vector<8x32xf32>
    %109 = arith.mulf %93, %101 : vector<8x32xf32>
    %110 = arith.addf %108, %109 : vector<8x32xf32>
    %111 = math.tanh %110 : vector<8x32xf32>
    %112 = arith.mulf %107, %111 : vector<8x32xf32>
    %cst_33 = arith.constant dense<0.000000e+00> : vector<8x128xf32>
    %113 = tpu.matmul %72, %8, %cst_33 {dimension_numbers = #tpu.dot_dimension_numbers<[1], [0], [0], [1], [0, 0, 1, 1], [], []>} : vector<8x32xf32>, vector<32x128xf32>, vector<8x128xf32> -> vector<8x128xf32>
    %114 = arith.addf %85, %113 : vector<8x128xf32>
    %115 = vector.extract_strided_slice %114 {offsets = [0, 0], sizes = [8, 32], strides = [1, 1]} : vector<8x128xf32> to vector<8x32xf32>
    %116 = arith.negf %115 : vector<8x32xf32>
    %117 = math.exp %116 : vector<8x32xf32>
    %cst_34 = arith.constant 1.000000e+00 : f32
    %118 = vector.broadcast %cst_34 : f32 to vector<8x32xf32>
    %119 = arith.addf %118, %117 : vector<8x32xf32>
    %120 = arith.divf %118, %119 : vector<8x32xf32>
    %121 = vector.extract_strided_slice %114 {offsets = [0, 32], sizes = [8, 32], strides = [1, 1]} : vector<8x128xf32> to vector<8x32xf32>
    %122 = arith.negf %121 : vector<8x32xf32>
    %123 = math.exp %122 : vector<8x32xf32>
    %cst_35 = arith.constant 1.000000e+00 : f32
    %124 = vector.broadcast %cst_35 : f32 to vector<8x32xf32>
    %125 = arith.addf %124, %123 : vector<8x32xf32>
    %126 = arith.divf %124, %125 : vector<8x32xf32>
    %127 = vector.extract_strided_slice %114 {offsets = [0, 64], sizes = [8, 32], strides = [1, 1]} : vector<8x128xf32> to vector<8x32xf32>
    %128 = math.tanh %127 : vector<8x32xf32>
    %129 = vector.extract_strided_slice %114 {offsets = [0, 96], sizes = [8, 32], strides = [1, 1]} : vector<8x128xf32> to vector<8x32xf32>
    %130 = arith.negf %129 : vector<8x32xf32>
    %131 = math.exp %130 : vector<8x32xf32>
    %cst_36 = arith.constant 1.000000e+00 : f32
    %132 = vector.broadcast %cst_36 : f32 to vector<8x32xf32>
    %133 = arith.addf %132, %131 : vector<8x32xf32>
    %134 = arith.divf %132, %133 : vector<8x32xf32>
    %135 = arith.mulf %126, %70 : vector<8x32xf32>
    %136 = arith.mulf %120, %128 : vector<8x32xf32>
    %137 = arith.addf %135, %136 : vector<8x32xf32>
    %138 = math.tanh %137 : vector<8x32xf32>
    %139 = arith.mulf %134, %138 : vector<8x32xf32>
    %140 = arith.index_cast %78 : i32 to index
    %c0_37 = arith.constant 0 : index
    %141 = vector.load %arg10[%140, %c0_37] : memref<64x32xf32, #tpu.memory_space<vmem>>, vector<8x32xf32>
    tpu.vector_store %arg10[%140, %c0_37], %112 {strides = array<i32>} : memref<64x32xf32, #tpu.memory_space<vmem>>, vector<8x32xf32>,
    %142 = arith.index_cast %81 : i32 to index
    %c0_38 = arith.constant 0 : index
    %143 = vector.load %arg11[%142, %c0_38] : memref<64x32xf32, #tpu.memory_space<vmem>>, vector<8x32xf32>
    tpu.vector_store %arg11[%142, %c0_38], %139 {strides = array<i32>} : memref<64x32xf32, #tpu.memory_space<vmem>>, vector<8x32xf32>,
    %c2_i32 = arith.constant 2 : i32
    %c8_i32_39 = arith.constant 8 : i32
    %144 = arith.muli %c2_i32, %c8_i32_39 : i32
    %145 = tpu.assume_multiple %144, 8 : i32
    %c7_i32_40 = arith.constant 7 : i32
    %146 = arith.subi %c7_i32_40, %c2_i32 : i32
    %c8_i32_41 = arith.constant 8 : i32
    %147 = arith.muli %146, %c8_i32_41 : i32
    %148 = tpu.assume_multiple %147, 8 : i32
    %149 = arith.index_cast %145 : i32 to index
    %c0_42 = arith.constant 0 : index
    %150 = vector.load %arg9[%149, %c0_42] : memref<64x256xf32, #tpu.memory_space<vmem>>, vector<8x128xf32>
    %151 = arith.index_cast %148 : i32 to index
    %c128_43 = arith.constant 128 : index
    %152 = vector.load %arg9[%151, %c128_43] : memref<64x256xf32, #tpu.memory_space<vmem>>, vector<8x128xf32>
    %cst_44 = arith.constant dense<0.000000e+00> : vector<8x128xf32>
    %153 = tpu.matmul %112, %7, %cst_44 {dimension_numbers = #tpu.dot_dimension_numbers<[1], [0], [0], [1], [0, 0, 1, 1], [], []>} : vector<8x32xf32>, vector<32x128xf32>, vector<8x128xf32> -> vector<8x128xf32>
    %154 = arith.addf %150, %153 : vector<8x128xf32>
    %155 = vector.extract_strided_slice %154 {offsets = [0, 0], sizes = [8, 32], strides = [1, 1]} : vector<8x128xf32> to vector<8x32xf32>
    %156 = arith.negf %155 : vector<8x32xf32>
    %157 = math.exp %156 : vector<8x32xf32>
    %cst_45 = arith.constant 1.000000e+00 : f32
    %158 = vector.broadcast %cst_45 : f32 to vector<8x32xf32>
    %159 = arith.addf %158, %157 : vector<8x32xf32>
    %160 = arith.divf %158, %159 : vector<8x32xf32>
    %161 = vector.extract_strided_slice %154 {offsets = [0, 32], sizes = [8, 32], strides = [1, 1]} : vector<8x128xf32> to vector<8x32xf32>
    %162 = arith.negf %161 : vector<8x32xf32>
    %163 = math.exp %162 : vector<8x32xf32>
    %cst_46 = arith.constant 1.000000e+00 : f32
    %164 = vector.broadcast %cst_46 : f32 to vector<8x32xf32>
    %165 = arith.addf %164, %163 : vector<8x32xf32>
    %166 = arith.divf %164, %165 : vector<8x32xf32>
    %167 = vector.extract_strided_slice %154 {offsets = [0, 64], sizes = [8, 32], strides = [1, 1]} : vector<8x128xf32> to vector<8x32xf32>
    %168 = math.tanh %167 : vector<8x32xf32>
    %169 = vector.extract_strided_slice %154 {offsets = [0, 96], sizes = [8, 32], strides = [1, 1]} : vector<8x128xf32> to vector<8x32xf32>
    %170 = arith.negf %169 : vector<8x32xf32>
    %171 = math.exp %170 : vector<8x32xf32>
    %cst_47 = arith.constant 1.000000e+00 : f32
    %172 = vector.broadcast %cst_47 : f32 to vector<8x32xf32>
    %173 = arith.addf %172, %171 : vector<8x32xf32>
    %174 = arith.divf %172, %173 : vector<8x32xf32>
    %175 = arith.mulf %166, %110 : vector<8x32xf32>
    %176 = arith.mulf %160, %168 : vector<8x32xf32>
    %177 = arith.addf %175, %176 : vector<8x32xf32>
    %178 = math.tanh %177 : vector<8x32xf32>
    %179 = arith.mulf %174, %178 : vector<8x32xf32>
    %cst_48 = arith.constant dense<0.000000e+00> : vector<8x128xf32>
    %180 = tpu.matmul %139, %8, %cst_48 {dimension_numbers = #tpu.dot_dimension_numbers<[1], [0], [0], [1], [0, 0, 1, 1], [], []>} : vector<8x32xf32>, vector<32x128xf32>, vector<8x128xf32> -> vector<8x128xf32>
    %181 = arith.addf %152, %180 : vector<8x128xf32>
    %182 = vector.extract_strided_slice %181 {offsets = [0, 0], sizes = [8, 32], strides = [1, 1]} : vector<8x128xf32> to vector<8x32xf32>
    %183 = arith.negf %182 : vector<8x32xf32>
    %184 = math.exp %183 : vector<8x32xf32>
    %cst_49 = arith.constant 1.000000e+00 : f32
    %185 = vector.broadcast %cst_49 : f32 to vector<8x32xf32>
    %186 = arith.addf %185, %184 : vector<8x32xf32>
    %187 = arith.divf %185, %186 : vector<8x32xf32>
    %188 = vector.extract_strided_slice %181 {offsets = [0, 32], sizes = [8, 32], strides = [1, 1]} : vector<8x128xf32> to vector<8x32xf32>
    %189 = arith.negf %188 : vector<8x32xf32>
    %190 = math.exp %189 : vector<8x32xf32>
    %cst_50 = arith.constant 1.000000e+00 : f32
    %191 = vector.broadcast %cst_50 : f32 to vector<8x32xf32>
    %192 = arith.addf %191, %190 : vector<8x32xf32>
    %193 = arith.divf %191, %192 : vector<8x32xf32>
    %194 = vector.extract_strided_slice %181 {offsets = [0, 64], sizes = [8, 32], strides = [1, 1]} : vector<8x128xf32> to vector<8x32xf32>
    %195 = math.tanh %194 : vector<8x32xf32>
    %196 = vector.extract_strided_slice %181 {offsets = [0, 96], sizes = [8, 32], strides = [1, 1]} : vector<8x128xf32> to vector<8x32xf32>
    %197 = arith.negf %196 : vector<8x32xf32>
    %198 = math.exp %197 : vector<8x32xf32>
    %cst_51 = arith.constant 1.000000e+00 : f32
    %199 = vector.broadcast %cst_51 : f32 to vector<8x32xf32>
    %200 = arith.addf %199, %198 : vector<8x32xf32>
    %201 = arith.divf %199, %200 : vector<8x32xf32>
    %202 = arith.mulf %193, %137 : vector<8x32xf32>
    %203 = arith.mulf %187, %195 : vector<8x32xf32>
    %204 = arith.addf %202, %203 : vector<8x32xf32>
    %205 = math.tanh %204 : vector<8x32xf32>
    %206 = arith.mulf %201, %205 : vector<8x32xf32>
    %207 = arith.index_cast %145 : i32 to index
    %c0_52 = arith.constant 0 : index
    %208 = vector.load %arg10[%207, %c0_52] : memref<64x32xf32, #tpu.memory_space<vmem>>, vector<8x32xf32>
    tpu.vector_store %arg10[%207, %c0_52], %179 {strides = array<i32>} : memref<64x32xf32, #tpu.memory_space<vmem>>, vector<8x32xf32>,
    %209 = arith.index_cast %148 : i32 to index
    %c0_53 = arith.constant 0 : index
    %210 = vector.load %arg11[%209, %c0_53] : memref<64x32xf32, #tpu.memory_space<vmem>>, vector<8x32xf32>
    tpu.vector_store %arg11[%209, %c0_53], %206 {strides = array<i32>} : memref<64x32xf32, #tpu.memory_space<vmem>>, vector<8x32xf32>,
    %c3_i32 = arith.constant 3 : i32
    %c8_i32_54 = arith.constant 8 : i32
    %211 = arith.muli %c3_i32, %c8_i32_54 : i32
    %212 = tpu.assume_multiple %211, 8 : i32
    %c7_i32_55 = arith.constant 7 : i32
    %213 = arith.subi %c7_i32_55, %c3_i32 : i32
    %c8_i32_56 = arith.constant 8 : i32
    %214 = arith.muli %213, %c8_i32_56 : i32
    %215 = tpu.assume_multiple %214, 8 : i32
    %216 = arith.index_cast %212 : i32 to index
    %c0_57 = arith.constant 0 : index
    %217 = vector.load %arg9[%216, %c0_57] : memref<64x256xf32, #tpu.memory_space<vmem>>, vector<8x128xf32>
    %218 = arith.index_cast %215 : i32 to index
    %c128_58 = arith.constant 128 : index
    %219 = vector.load %arg9[%218, %c128_58] : memref<64x256xf32, #tpu.memory_space<vmem>>, vector<8x128xf32>
    %cst_59 = arith.constant dense<0.000000e+00> : vector<8x128xf32>
    %220 = tpu.matmul %179, %7, %cst_59 {dimension_numbers = #tpu.dot_dimension_numbers<[1], [0], [0], [1], [0, 0, 1, 1], [], []>} : vector<8x32xf32>, vector<32x128xf32>, vector<8x128xf32> -> vector<8x128xf32>
    %221 = arith.addf %217, %220 : vector<8x128xf32>
    %222 = vector.extract_strided_slice %221 {offsets = [0, 0], sizes = [8, 32], strides = [1, 1]} : vector<8x128xf32> to vector<8x32xf32>
    %223 = arith.negf %222 : vector<8x32xf32>
    %224 = math.exp %223 : vector<8x32xf32>
    %cst_60 = arith.constant 1.000000e+00 : f32
    %225 = vector.broadcast %cst_60 : f32 to vector<8x32xf32>
    %226 = arith.addf %225, %224 : vector<8x32xf32>
    %227 = arith.divf %225, %226 : vector<8x32xf32>
    %228 = vector.extract_strided_slice %221 {offsets = [0, 32], sizes = [8, 32], strides = [1, 1]} : vector<8x128xf32> to vector<8x32xf32>
    %229 = arith.negf %228 : vector<8x32xf32>
    %230 = math.exp %229 : vector<8x32xf32>
    %cst_61 = arith.constant 1.000000e+00 : f32
    %231 = vector.broadcast %cst_61 : f32 to vector<8x32xf32>
    %232 = arith.addf %231, %230 : vector<8x32xf32>
    %233 = arith.divf %231, %232 : vector<8x32xf32>
    %234 = vector.extract_strided_slice %221 {offsets = [0, 64], sizes = [8, 32], strides = [1, 1]} : vector<8x128xf32> to vector<8x32xf32>
    %235 = math.tanh %234 : vector<8x32xf32>
    %236 = vector.extract_strided_slice %221 {offsets = [0, 96], sizes = [8, 32], strides = [1, 1]} : vector<8x128xf32> to vector<8x32xf32>
    %237 = arith.negf %236 : vector<8x32xf32>
    %238 = math.exp %237 : vector<8x32xf32>
    %cst_62 = arith.constant 1.000000e+00 : f32
    %239 = vector.broadcast %cst_62 : f32 to vector<8x32xf32>
    %240 = arith.addf %239, %238 : vector<8x32xf32>
    %241 = arith.divf %239, %240 : vector<8x32xf32>
    %242 = arith.mulf %233, %177 : vector<8x32xf32>
    %243 = arith.mulf %227, %235 : vector<8x32xf32>
    %244 = arith.addf %242, %243 : vector<8x32xf32>
    %245 = math.tanh %244 : vector<8x32xf32>
    %246 = arith.mulf %241, %245 : vector<8x32xf32>
    %cst_63 = arith.constant dense<0.000000e+00> : vector<8x128xf32>
    %247 = tpu.matmul %206, %8, %cst_63 {dimension_numbers = #tpu.dot_dimension_numbers<[1], [0], [0], [1], [0, 0, 1, 1], [], []>} : vector<8x32xf32>, vector<32x128xf32>, vector<8x128xf32> -> vector<8x128xf32>
    %248 = arith.addf %219, %247 : vector<8x128xf32>
    %249 = vector.extract_strided_slice %248 {offsets = [0, 0], sizes = [8, 32], strides = [1, 1]} : vector<8x128xf32> to vector<8x32xf32>
    %250 = arith.negf %249 : vector<8x32xf32>
    %251 = math.exp %250 : vector<8x32xf32>
    %cst_64 = arith.constant 1.000000e+00 : f32
    %252 = vector.broadcast %cst_64 : f32 to vector<8x32xf32>
    %253 = arith.addf %252, %251 : vector<8x32xf32>
    %254 = arith.divf %252, %253 : vector<8x32xf32>
    %255 = vector.extract_strided_slice %248 {offsets = [0, 32], sizes = [8, 32], strides = [1, 1]} : vector<8x128xf32> to vector<8x32xf32>
    %256 = arith.negf %255 : vector<8x32xf32>
    %257 = math.exp %256 : vector<8x32xf32>
    %cst_65 = arith.constant 1.000000e+00 : f32
    %258 = vector.broadcast %cst_65 : f32 to vector<8x32xf32>
    %259 = arith.addf %258, %257 : vector<8x32xf32>
    %260 = arith.divf %258, %259 : vector<8x32xf32>
    %261 = vector.extract_strided_slice %248 {offsets = [0, 64], sizes = [8, 32], strides = [1, 1]} : vector<8x128xf32> to vector<8x32xf32>
    %262 = math.tanh %261 : vector<8x32xf32>
    %263 = vector.extract_strided_slice %248 {offsets = [0, 96], sizes = [8, 32], strides = [1, 1]} : vector<8x128xf32> to vector<8x32xf32>
    %264 = arith.negf %263 : vector<8x32xf32>
    %265 = math.exp %264 : vector<8x32xf32>
    %cst_66 = arith.constant 1.000000e+00 : f32
    %266 = vector.broadcast %cst_66 : f32 to vector<8x32xf32>
    %267 = arith.addf %266, %265 : vector<8x32xf32>
    %268 = arith.divf %266, %267 : vector<8x32xf32>
    %269 = arith.mulf %260, %204 : vector<8x32xf32>
    %270 = arith.mulf %254, %262 : vector<8x32xf32>
    %271 = arith.addf %269, %270 : vector<8x32xf32>
    %272 = math.tanh %271 : vector<8x32xf32>
    %273 = arith.mulf %268, %272 : vector<8x32xf32>
    %274 = arith.index_cast %212 : i32 to index
    %c0_67 = arith.constant 0 : index
    %275 = vector.load %arg10[%274, %c0_67] : memref<64x32xf32, #tpu.memory_space<vmem>>, vector<8x32xf32>
    tpu.vector_store %arg10[%274, %c0_67], %246 {strides = array<i32>} : memref<64x32xf32, #tpu.memory_space<vmem>>, vector<8x32xf32>,
    %276 = arith.index_cast %215 : i32 to index
    %c0_68 = arith.constant 0 : index
    %277 = vector.load %arg11[%276, %c0_68] : memref<64x32xf32, #tpu.memory_space<vmem>>, vector<8x32xf32>
    tpu.vector_store %arg11[%276, %c0_68], %273 {strides = array<i32>} : memref<64x32xf32, #tpu.memory_space<vmem>>, vector<8x32xf32>,
    %c4_i32 = arith.constant 4 : i32
    %c8_i32_69 = arith.constant 8 : i32
    %278 = arith.muli %c4_i32, %c8_i32_69 : i32
    %279 = tpu.assume_multiple %278, 8 : i32
    %c7_i32_70 = arith.constant 7 : i32
    %280 = arith.subi %c7_i32_70, %c4_i32 : i32
    %c8_i32_71 = arith.constant 8 : i32
    %281 = arith.muli %280, %c8_i32_71 : i32
    %282 = tpu.assume_multiple %281, 8 : i32
    %283 = arith.index_cast %279 : i32 to index
    %c0_72 = arith.constant 0 : index
    %284 = vector.load %arg9[%283, %c0_72] : memref<64x256xf32, #tpu.memory_space<vmem>>, vector<8x128xf32>
    %285 = arith.index_cast %282 : i32 to index
    %c128_73 = arith.constant 128 : index
    %286 = vector.load %arg9[%285, %c128_73] : memref<64x256xf32, #tpu.memory_space<vmem>>, vector<8x128xf32>
    %cst_74 = arith.constant dense<0.000000e+00> : vector<8x128xf32>
    %287 = tpu.matmul %246, %7, %cst_74 {dimension_numbers = #tpu.dot_dimension_numbers<[1], [0], [0], [1], [0, 0, 1, 1], [], []>} : vector<8x32xf32>, vector<32x128xf32>, vector<8x128xf32> -> vector<8x128xf32>
    %288 = arith.addf %284, %287 : vector<8x128xf32>
    %289 = vector.extract_strided_slice %288 {offsets = [0, 0], sizes = [8, 32], strides = [1, 1]} : vector<8x128xf32> to vector<8x32xf32>
    %290 = arith.negf %289 : vector<8x32xf32>
    %291 = math.exp %290 : vector<8x32xf32>
    %cst_75 = arith.constant 1.000000e+00 : f32
    %292 = vector.broadcast %cst_75 : f32 to vector<8x32xf32>
    %293 = arith.addf %292, %291 : vector<8x32xf32>
    %294 = arith.divf %292, %293 : vector<8x32xf32>
    %295 = vector.extract_strided_slice %288 {offsets = [0, 32], sizes = [8, 32], strides = [1, 1]} : vector<8x128xf32> to vector<8x32xf32>
    %296 = arith.negf %295 : vector<8x32xf32>
    %297 = math.exp %296 : vector<8x32xf32>
    %cst_76 = arith.constant 1.000000e+00 : f32
    %298 = vector.broadcast %cst_76 : f32 to vector<8x32xf32>
    %299 = arith.addf %298, %297 : vector<8x32xf32>
    %300 = arith.divf %298, %299 : vector<8x32xf32>
    %301 = vector.extract_strided_slice %288 {offsets = [0, 64], sizes = [8, 32], strides = [1, 1]} : vector<8x128xf32> to vector<8x32xf32>
    %302 = math.tanh %301 : vector<8x32xf32>
    %303 = vector.extract_strided_slice %288 {offsets = [0, 96], sizes = [8, 32], strides = [1, 1]} : vector<8x128xf32> to vector<8x32xf32>
    %304 = arith.negf %303 : vector<8x32xf32>
    %305 = math.exp %304 : vector<8x32xf32>
    %cst_77 = arith.constant 1.000000e+00 : f32
    %306 = vector.broadcast %cst_77 : f32 to vector<8x32xf32>
    %307 = arith.addf %306, %305 : vector<8x32xf32>
    %308 = arith.divf %306, %307 : vector<8x32xf32>
    %309 = arith.mulf %300, %244 : vector<8x32xf32>
    %310 = arith.mulf %294, %302 : vector<8x32xf32>
    %311 = arith.addf %309, %310 : vector<8x32xf32>
    %312 = math.tanh %311 : vector<8x32xf32>
    %313 = arith.mulf %308, %312 : vector<8x32xf32>
    %cst_78 = arith.constant dense<0.000000e+00> : vector<8x128xf32>
    %314 = tpu.matmul %273, %8, %cst_78 {dimension_numbers = #tpu.dot_dimension_numbers<[1], [0], [0], [1], [0, 0, 1, 1], [], []>} : vector<8x32xf32>, vector<32x128xf32>, vector<8x128xf32> -> vector<8x128xf32>
    %315 = arith.addf %286, %314 : vector<8x128xf32>
    %316 = vector.extract_strided_slice %315 {offsets = [0, 0], sizes = [8, 32], strides = [1, 1]} : vector<8x128xf32> to vector<8x32xf32>
    %317 = arith.negf %316 : vector<8x32xf32>
    %318 = math.exp %317 : vector<8x32xf32>
    %cst_79 = arith.constant 1.000000e+00 : f32
    %319 = vector.broadcast %cst_79 : f32 to vector<8x32xf32>
    %320 = arith.addf %319, %318 : vector<8x32xf32>
    %321 = arith.divf %319, %320 : vector<8x32xf32>
    %322 = vector.extract_strided_slice %315 {offsets = [0, 32], sizes = [8, 32], strides = [1, 1]} : vector<8x128xf32> to vector<8x32xf32>
    %323 = arith.negf %322 : vector<8x32xf32>
    %324 = math.exp %323 : vector<8x32xf32>
    %cst_80 = arith.constant 1.000000e+00 : f32
    %325 = vector.broadcast %cst_80 : f32 to vector<8x32xf32>
    %326 = arith.addf %325, %324 : vector<8x32xf32>
    %327 = arith.divf %325, %326 : vector<8x32xf32>
    %328 = vector.extract_strided_slice %315 {offsets = [0, 64], sizes = [8, 32], strides = [1, 1]} : vector<8x128xf32> to vector<8x32xf32>
    %329 = math.tanh %328 : vector<8x32xf32>
    %330 = vector.extract_strided_slice %315 {offsets = [0, 96], sizes = [8, 32], strides = [1, 1]} : vector<8x128xf32> to vector<8x32xf32>
    %331 = arith.negf %330 : vector<8x32xf32>
    %332 = math.exp %331 : vector<8x32xf32>
    %cst_81 = arith.constant 1.000000e+00 : f32
    %333 = vector.broadcast %cst_81 : f32 to vector<8x32xf32>
    %334 = arith.addf %333, %332 : vector<8x32xf32>
    %335 = arith.divf %333, %334 : vector<8x32xf32>
    %336 = arith.mulf %327, %271 : vector<8x32xf32>
    %337 = arith.mulf %321, %329 : vector<8x32xf32>
    %338 = arith.addf %336, %337 : vector<8x32xf32>
    %339 = math.tanh %338 : vector<8x32xf32>
    %340 = arith.mulf %335, %339 : vector<8x32xf32>
    %341 = arith.index_cast %279 : i32 to index
    %c0_82 = arith.constant 0 : index
    %342 = vector.load %arg10[%341, %c0_82] : memref<64x32xf32, #tpu.memory_space<vmem>>, vector<8x32xf32>
    tpu.vector_store %arg10[%341, %c0_82], %313 {strides = array<i32>} : memref<64x32xf32, #tpu.memory_space<vmem>>, vector<8x32xf32>,
    %343 = arith.index_cast %282 : i32 to index
    %c0_83 = arith.constant 0 : index
    %344 = vector.load %arg11[%343, %c0_83] : memref<64x32xf32, #tpu.memory_space<vmem>>, vector<8x32xf32>
    tpu.vector_store %arg11[%343, %c0_83], %340 {strides = array<i32>} : memref<64x32xf32, #tpu.memory_space<vmem>>, vector<8x32xf32>,
    %c5_i32 = arith.constant 5 : i32
    %c8_i32_84 = arith.constant 8 : i32
    %345 = arith.muli %c5_i32, %c8_i32_84 : i32
    %346 = tpu.assume_multiple %345, 8 : i32
    %c7_i32_85 = arith.constant 7 : i32
    %347 = arith.subi %c7_i32_85, %c5_i32 : i32
    %c8_i32_86 = arith.constant 8 : i32
    %348 = arith.muli %347, %c8_i32_86 : i32
    %349 = tpu.assume_multiple %348, 8 : i32
    %350 = arith.index_cast %346 : i32 to index
    %c0_87 = arith.constant 0 : index
    %351 = vector.load %arg9[%350, %c0_87] : memref<64x256xf32, #tpu.memory_space<vmem>>, vector<8x128xf32>
    %352 = arith.index_cast %349 : i32 to index
    %c128_88 = arith.constant 128 : index
    %353 = vector.load %arg9[%352, %c128_88] : memref<64x256xf32, #tpu.memory_space<vmem>>, vector<8x128xf32>
    %cst_89 = arith.constant dense<0.000000e+00> : vector<8x128xf32>
    %354 = tpu.matmul %313, %7, %cst_89 {dimension_numbers = #tpu.dot_dimension_numbers<[1], [0], [0], [1], [0, 0, 1, 1], [], []>} : vector<8x32xf32>, vector<32x128xf32>, vector<8x128xf32> -> vector<8x128xf32>
    %355 = arith.addf %351, %354 : vector<8x128xf32>
    %356 = vector.extract_strided_slice %355 {offsets = [0, 0], sizes = [8, 32], strides = [1, 1]} : vector<8x128xf32> to vector<8x32xf32>
    %357 = arith.negf %356 : vector<8x32xf32>
    %358 = math.exp %357 : vector<8x32xf32>
    %cst_90 = arith.constant 1.000000e+00 : f32
    %359 = vector.broadcast %cst_90 : f32 to vector<8x32xf32>
    %360 = arith.addf %359, %358 : vector<8x32xf32>
    %361 = arith.divf %359, %360 : vector<8x32xf32>
    %362 = vector.extract_strided_slice %355 {offsets = [0, 32], sizes = [8, 32], strides = [1, 1]} : vector<8x128xf32> to vector<8x32xf32>
    %363 = arith.negf %362 : vector<8x32xf32>
    %364 = math.exp %363 : vector<8x32xf32>
    %cst_91 = arith.constant 1.000000e+00 : f32
    %365 = vector.broadcast %cst_91 : f32 to vector<8x32xf32>
    %366 = arith.addf %365, %364 : vector<8x32xf32>
    %367 = arith.divf %365, %366 : vector<8x32xf32>
    %368 = vector.extract_strided_slice %355 {offsets = [0, 64], sizes = [8, 32], strides = [1, 1]} : vector<8x128xf32> to vector<8x32xf32>
    %369 = math.tanh %368 : vector<8x32xf32>
    %370 = vector.extract_strided_slice %355 {offsets = [0, 96], sizes = [8, 32], strides = [1, 1]} : vector<8x128xf32> to vector<8x32xf32>
    %371 = arith.negf %370 : vector<8x32xf32>
    %372 = math.exp %371 : vector<8x32xf32>
    %cst_92 = arith.constant 1.000000e+00 : f32
    %373 = vector.broadcast %cst_92 : f32 to vector<8x32xf32>
    %374 = arith.addf %373, %372 : vector<8x32xf32>
    %375 = arith.divf %373, %374 : vector<8x32xf32>
    %376 = arith.mulf %367, %311 : vector<8x32xf32>
    %377 = arith.mulf %361, %369 : vector<8x32xf32>
    %378 = arith.addf %376, %377 : vector<8x32xf32>
    %379 = math.tanh %378 : vector<8x32xf32>
    %380 = arith.mulf %375, %379 : vector<8x32xf32>
    %cst_93 = arith.constant dense<0.000000e+00> : vector<8x128xf32>
    %381 = tpu.matmul %340, %8, %cst_93 {dimension_numbers = #tpu.dot_dimension_numbers<[1], [0], [0], [1], [0, 0, 1, 1], [], []>} : vector<8x32xf32>, vector<32x128xf32>, vector<8x128xf32> -> vector<8x128xf32>
    %382 = arith.addf %353, %381 : vector<8x128xf32>
    %383 = vector.extract_strided_slice %382 {offsets = [0, 0], sizes = [8, 32], strides = [1, 1]} : vector<8x128xf32> to vector<8x32xf32>
    %384 = arith.negf %383 : vector<8x32xf32>
    %385 = math.exp %384 : vector<8x32xf32>
    %cst_94 = arith.constant 1.000000e+00 : f32
    %386 = vector.broadcast %cst_94 : f32 to vector<8x32xf32>
    %387 = arith.addf %386, %385 : vector<8x32xf32>
    %388 = arith.divf %386, %387 : vector<8x32xf32>
    %389 = vector.extract_strided_slice %382 {offsets = [0, 32], sizes = [8, 32], strides = [1, 1]} : vector<8x128xf32> to vector<8x32xf32>
    %390 = arith.negf %389 : vector<8x32xf32>
    %391 = math.exp %390 : vector<8x32xf32>
    %cst_95 = arith.constant 1.000000e+00 : f32
    %392 = vector.broadcast %cst_95 : f32 to vector<8x32xf32>
    %393 = arith.addf %392, %391 : vector<8x32xf32>
    %394 = arith.divf %392, %393 : vector<8x32xf32>
    %395 = vector.extract_strided_slice %382 {offsets = [0, 64], sizes = [8, 32], strides = [1, 1]} : vector<8x128xf32> to vector<8x32xf32>
    %396 = math.tanh %395 : vector<8x32xf32>
    %397 = vector.extract_strided_slice %382 {offsets = [0, 96], sizes = [8, 32], strides = [1, 1]} : vector<8x128xf32> to vector<8x32xf32>
    %398 = arith.negf %397 : vector<8x32xf32>
    %399 = math.exp %398 : vector<8x32xf32>
    %cst_96 = arith.constant 1.000000e+00 : f32
    %400 = vector.broadcast %cst_96 : f32 to vector<8x32xf32>
    %401 = arith.addf %400, %399 : vector<8x32xf32>
    %402 = arith.divf %400, %401 : vector<8x32xf32>
    %403 = arith.mulf %394, %338 : vector<8x32xf32>
    %404 = arith.mulf %388, %396 : vector<8x32xf32>
    %405 = arith.addf %403, %404 : vector<8x32xf32>
    %406 = math.tanh %405 : vector<8x32xf32>
    %407 = arith.mulf %402, %406 : vector<8x32xf32>
    %408 = arith.index_cast %346 : i32 to index
    %c0_97 = arith.constant 0 : index
    %409 = vector.load %arg10[%408, %c0_97] : memref<64x32xf32, #tpu.memory_space<vmem>>, vector<8x32xf32>
    tpu.vector_store %arg10[%408, %c0_97], %380 {strides = array<i32>} : memref<64x32xf32, #tpu.memory_space<vmem>>, vector<8x32xf32>,
    %410 = arith.index_cast %349 : i32 to index
    %c0_98 = arith.constant 0 : index
    %411 = vector.load %arg11[%410, %c0_98] : memref<64x32xf32, #tpu.memory_space<vmem>>, vector<8x32xf32>
    tpu.vector_store %arg11[%410, %c0_98], %407 {strides = array<i32>} : memref<64x32xf32, #tpu.memory_space<vmem>>, vector<8x32xf32>,
    %c6_i32 = arith.constant 6 : i32
    %c8_i32_99 = arith.constant 8 : i32
    %412 = arith.muli %c6_i32, %c8_i32_99 : i32
    %413 = tpu.assume_multiple %412, 8 : i32
    %c7_i32_100 = arith.constant 7 : i32
    %414 = arith.subi %c7_i32_100, %c6_i32 : i32
    %c8_i32_101 = arith.constant 8 : i32
    %415 = arith.muli %414, %c8_i32_101 : i32
    %416 = tpu.assume_multiple %415, 8 : i32
    %417 = arith.index_cast %413 : i32 to index
    %c0_102 = arith.constant 0 : index
    %418 = vector.load %arg9[%417, %c0_102] : memref<64x256xf32, #tpu.memory_space<vmem>>, vector<8x128xf32>
    %419 = arith.index_cast %416 : i32 to index
    %c128_103 = arith.constant 128 : index
    %420 = vector.load %arg9[%419, %c128_103] : memref<64x256xf32, #tpu.memory_space<vmem>>, vector<8x128xf32>
    %cst_104 = arith.constant dense<0.000000e+00> : vector<8x128xf32>
    %421 = tpu.matmul %380, %7, %cst_104 {dimension_numbers = #tpu.dot_dimension_numbers<[1], [0], [0], [1], [0, 0, 1, 1], [], []>} : vector<8x32xf32>, vector<32x128xf32>, vector<8x128xf32> -> vector<8x128xf32>
    %422 = arith.addf %418, %421 : vector<8x128xf32>
    %423 = vector.extract_strided_slice %422 {offsets = [0, 0], sizes = [8, 32], strides = [1, 1]} : vector<8x128xf32> to vector<8x32xf32>
    %424 = arith.negf %423 : vector<8x32xf32>
    %425 = math.exp %424 : vector<8x32xf32>
    %cst_105 = arith.constant 1.000000e+00 : f32
    %426 = vector.broadcast %cst_105 : f32 to vector<8x32xf32>
    %427 = arith.addf %426, %425 : vector<8x32xf32>
    %428 = arith.divf %426, %427 : vector<8x32xf32>
    %429 = vector.extract_strided_slice %422 {offsets = [0, 32], sizes = [8, 32], strides = [1, 1]} : vector<8x128xf32> to vector<8x32xf32>
    %430 = arith.negf %429 : vector<8x32xf32>
    %431 = math.exp %430 : vector<8x32xf32>
    %cst_106 = arith.constant 1.000000e+00 : f32
    %432 = vector.broadcast %cst_106 : f32 to vector<8x32xf32>
    %433 = arith.addf %432, %431 : vector<8x32xf32>
    %434 = arith.divf %432, %433 : vector<8x32xf32>
    %435 = vector.extract_strided_slice %422 {offsets = [0, 64], sizes = [8, 32], strides = [1, 1]} : vector<8x128xf32> to vector<8x32xf32>
    %436 = math.tanh %435 : vector<8x32xf32>
    %437 = vector.extract_strided_slice %422 {offsets = [0, 96], sizes = [8, 32], strides = [1, 1]} : vector<8x128xf32> to vector<8x32xf32>
    %438 = arith.negf %437 : vector<8x32xf32>
    %439 = math.exp %438 : vector<8x32xf32>
    %cst_107 = arith.constant 1.000000e+00 : f32
    %440 = vector.broadcast %cst_107 : f32 to vector<8x32xf32>
    %441 = arith.addf %440, %439 : vector<8x32xf32>
    %442 = arith.divf %440, %441 : vector<8x32xf32>
    %443 = arith.mulf %434, %378 : vector<8x32xf32>
    %444 = arith.mulf %428, %436 : vector<8x32xf32>
    %445 = arith.addf %443, %444 : vector<8x32xf32>
    %446 = math.tanh %445 : vector<8x32xf32>
    %447 = arith.mulf %442, %446 : vector<8x32xf32>
    %cst_108 = arith.constant dense<0.000000e+00> : vector<8x128xf32>
    %448 = tpu.matmul %407, %8, %cst_108 {dimension_numbers = #tpu.dot_dimension_numbers<[1], [0], [0], [1], [0, 0, 1, 1], [], []>} : vector<8x32xf32>, vector<32x128xf32>, vector<8x128xf32> -> vector<8x128xf32>
    %449 = arith.addf %420, %448 : vector<8x128xf32>
    %450 = vector.extract_strided_slice %449 {offsets = [0, 0], sizes = [8, 32], strides = [1, 1]} : vector<8x128xf32> to vector<8x32xf32>
    %451 = arith.negf %450 : vector<8x32xf32>
    %452 = math.exp %451 : vector<8x32xf32>
    %cst_109 = arith.constant 1.000000e+00 : f32
    %453 = vector.broadcast %cst_109 : f32 to vector<8x32xf32>
    %454 = arith.addf %453, %452 : vector<8x32xf32>
    %455 = arith.divf %453, %454 : vector<8x32xf32>
    %456 = vector.extract_strided_slice %449 {offsets = [0, 32], sizes = [8, 32], strides = [1, 1]} : vector<8x128xf32> to vector<8x32xf32>
    %457 = arith.negf %456 : vector<8x32xf32>
    %458 = math.exp %457 : vector<8x32xf32>
    %cst_110 = arith.constant 1.000000e+00 : f32
    %459 = vector.broadcast %cst_110 : f32 to vector<8x32xf32>
    %460 = arith.addf %459, %458 : vector<8x32xf32>
    %461 = arith.divf %459, %460 : vector<8x32xf32>
    %462 = vector.extract_strided_slice %449 {offsets = [0, 64], sizes = [8, 32], strides = [1, 1]} : vector<8x128xf32> to vector<8x32xf32>
    %463 = math.tanh %462 : vector<8x32xf32>
    %464 = vector.extract_strided_slice %449 {offsets = [0, 96], sizes = [8, 32], strides = [1, 1]} : vector<8x128xf32> to vector<8x32xf32>
    %465 = arith.negf %464 : vector<8x32xf32>
    %466 = math.exp %465 : vector<8x32xf32>
    %cst_111 = arith.constant 1.000000e+00 : f32
    %467 = vector.broadcast %cst_111 : f32 to vector<8x32xf32>
    %468 = arith.addf %467, %466 : vector<8x32xf32>
    %469 = arith.divf %467, %468 : vector<8x32xf32>
    %470 = arith.mulf %461, %405 : vector<8x32xf32>
    %471 = arith.mulf %455, %463 : vector<8x32xf32>
    %472 = arith.addf %470, %471 : vector<8x32xf32>
    %473 = math.tanh %472 : vector<8x32xf32>
    %474 = arith.mulf %469, %473 : vector<8x32xf32>
    %475 = arith.index_cast %413 : i32 to index
    %c0_112 = arith.constant 0 : index
    %476 = vector.load %arg10[%475, %c0_112] : memref<64x32xf32, #tpu.memory_space<vmem>>, vector<8x32xf32>
    tpu.vector_store %arg10[%475, %c0_112], %447 {strides = array<i32>} : memref<64x32xf32, #tpu.memory_space<vmem>>, vector<8x32xf32>,
    %477 = arith.index_cast %416 : i32 to index
    %c0_113 = arith.constant 0 : index
    %478 = vector.load %arg11[%477, %c0_113] : memref<64x32xf32, #tpu.memory_space<vmem>>, vector<8x32xf32>
    tpu.vector_store %arg11[%477, %c0_113], %474 {strides = array<i32>} : memref<64x32xf32, #tpu.memory_space<vmem>>, vector<8x32xf32>,
    %c7_i32_114 = arith.constant 7 : i32
    %c8_i32_115 = arith.constant 8 : i32
    %479 = arith.muli %c7_i32_114, %c8_i32_115 : i32
    %480 = tpu.assume_multiple %479, 8 : i32
    %c7_i32_116 = arith.constant 7 : i32
    %481 = arith.subi %c7_i32_116, %c7_i32_114 : i32
    %c8_i32_117 = arith.constant 8 : i32
    %482 = arith.muli %481, %c8_i32_117 : i32
    %483 = tpu.assume_multiple %482, 8 : i32
    %484 = arith.index_cast %480 : i32 to index
    %c0_118 = arith.constant 0 : index
    %485 = vector.load %arg9[%484, %c0_118] : memref<64x256xf32, #tpu.memory_space<vmem>>, vector<8x128xf32>
    %486 = arith.index_cast %483 : i32 to index
    %c128_119 = arith.constant 128 : index
    %487 = vector.load %arg9[%486, %c128_119] : memref<64x256xf32, #tpu.memory_space<vmem>>, vector<8x128xf32>
    %cst_120 = arith.constant dense<0.000000e+00> : vector<8x128xf32>
    %488 = tpu.matmul %447, %7, %cst_120 {dimension_numbers = #tpu.dot_dimension_numbers<[1], [0], [0], [1], [0, 0, 1, 1], [], []>} : vector<8x32xf32>, vector<32x128xf32>, vector<8x128xf32> -> vector<8x128xf32>
    %489 = arith.addf %485, %488 : vector<8x128xf32>
    %490 = vector.extract_strided_slice %489 {offsets = [0, 0], sizes = [8, 32], strides = [1, 1]} : vector<8x128xf32> to vector<8x32xf32>
    %491 = arith.negf %490 : vector<8x32xf32>
    %492 = math.exp %491 : vector<8x32xf32>
    %cst_121 = arith.constant 1.000000e+00 : f32
    %493 = vector.broadcast %cst_121 : f32 to vector<8x32xf32>
    %494 = arith.addf %493, %492 : vector<8x32xf32>
    %495 = arith.divf %493, %494 : vector<8x32xf32>
    %496 = vector.extract_strided_slice %489 {offsets = [0, 32], sizes = [8, 32], strides = [1, 1]} : vector<8x128xf32> to vector<8x32xf32>
    %497 = arith.negf %496 : vector<8x32xf32>
    %498 = math.exp %497 : vector<8x32xf32>
    %cst_122 = arith.constant 1.000000e+00 : f32
    %499 = vector.broadcast %cst_122 : f32 to vector<8x32xf32>
    %500 = arith.addf %499, %498 : vector<8x32xf32>
    %501 = arith.divf %499, %500 : vector<8x32xf32>
    %502 = vector.extract_strided_slice %489 {offsets = [0, 64], sizes = [8, 32], strides = [1, 1]} : vector<8x128xf32> to vector<8x32xf32>
    %503 = math.tanh %502 : vector<8x32xf32>
    %504 = vector.extract_strided_slice %489 {offsets = [0, 96], sizes = [8, 32], strides = [1, 1]} : vector<8x128xf32> to vector<8x32xf32>
    %505 = arith.negf %504 : vector<8x32xf32>
    %506 = math.exp %505 : vector<8x32xf32>
    %cst_123 = arith.constant 1.000000e+00 : f32
    %507 = vector.broadcast %cst_123 : f32 to vector<8x32xf32>
    %508 = arith.addf %507, %506 : vector<8x32xf32>
    %509 = arith.divf %507, %508 : vector<8x32xf32>
    %510 = arith.mulf %501, %445 : vector<8x32xf32>
    %511 = arith.mulf %495, %503 : vector<8x32xf32>
    %512 = arith.addf %510, %511 : vector<8x32xf32>
    %513 = math.tanh %512 : vector<8x32xf32>
    %514 = arith.mulf %509, %513 : vector<8x32xf32>
    %cst_124 = arith.constant dense<0.000000e+00> : vector<8x128xf32>
    %515 = tpu.matmul %474, %8, %cst_124 {dimension_numbers = #tpu.dot_dimension_numbers<[1], [0], [0], [1], [0, 0, 1, 1], [], []>} : vector<8x32xf32>, vector<32x128xf32>, vector<8x128xf32> -> vector<8x128xf32>
    %516 = arith.addf %487, %515 : vector<8x128xf32>
    %517 = vector.extract_strided_slice %516 {offsets = [0, 0], sizes = [8, 32], strides = [1, 1]} : vector<8x128xf32> to vector<8x32xf32>
    %518 = arith.negf %517 : vector<8x32xf32>
    %519 = math.exp %518 : vector<8x32xf32>
    %cst_125 = arith.constant 1.000000e+00 : f32
    %520 = vector.broadcast %cst_125 : f32 to vector<8x32xf32>
    %521 = arith.addf %520, %519 : vector<8x32xf32>
    %522 = arith.divf %520, %521 : vector<8x32xf32>
    %523 = vector.extract_strided_slice %516 {offsets = [0, 32], sizes = [8, 32], strides = [1, 1]} : vector<8x128xf32> to vector<8x32xf32>
    %524 = arith.negf %523 : vector<8x32xf32>
    %525 = math.exp %524 : vector<8x32xf32>
    %cst_126 = arith.constant 1.000000e+00 : f32
    %526 = vector.broadcast %cst_126 : f32 to vector<8x32xf32>
    %527 = arith.addf %526, %525 : vector<8x32xf32>
    %528 = arith.divf %526, %527 : vector<8x32xf32>
    %529 = vector.extract_strided_slice %516 {offsets = [0, 64], sizes = [8, 32], strides = [1, 1]} : vector<8x128xf32> to vector<8x32xf32>
    %530 = math.tanh %529 : vector<8x32xf32>
    %531 = vector.extract_strided_slice %516 {offsets = [0, 96], sizes = [8, 32], strides = [1, 1]} : vector<8x128xf32> to vector<8x32xf32>
    %532 = arith.negf %531 : vector<8x32xf32>
    %533 = math.exp %532 : vector<8x32xf32>
    %cst_127 = arith.constant 1.000000e+00 : f32
    %534 = vector.broadcast %cst_127 : f32 to vector<8x32xf32>
    %535 = arith.addf %534, %533 : vector<8x32xf32>
    %536 = arith.divf %534, %535 : vector<8x32xf32>
    %537 = arith.mulf %528, %472 : vector<8x32xf32>
    %538 = arith.mulf %522, %530 : vector<8x32xf32>
    %539 = arith.addf %537, %538 : vector<8x32xf32>
    %540 = math.tanh %539 : vector<8x32xf32>
    %541 = arith.mulf %536, %540 : vector<8x32xf32>
    %542 = arith.index_cast %480 : i32 to index
    %c0_128 = arith.constant 0 : index
    %543 = vector.load %arg10[%542, %c0_128] : memref<64x32xf32, #tpu.memory_space<vmem>>, vector<8x32xf32>
    tpu.vector_store %arg10[%542, %c0_128], %514 {strides = array<i32>} : memref<64x32xf32, #tpu.memory_space<vmem>>, vector<8x32xf32>,
    %544 = arith.index_cast %483 : i32 to index
    %c0_129 = arith.constant 0 : index
    %545 = vector.load %arg11[%544, %c0_129] : memref<64x32xf32, #tpu.memory_space<vmem>>, vector<8x32xf32>
    tpu.vector_store %arg11[%544, %c0_129], %541 {strides = array<i32>} : memref<64x32xf32, #tpu.memory_space<vmem>>, vector<8x32xf32>,
    %c8_i32_130 = arith.constant 8 : i32
    %c0_131 = arith.constant 0 : index
    %c0_132 = arith.constant 0 : index
    %546 = vector.load %arg10[%c0_131, %c0_132] : memref<64x32xf32, #tpu.memory_space<vmem>>, vector<64x32xf32>
    %c0_133 = arith.constant 0 : index
    %c0_134 = arith.constant 0 : index
    %547 = vector.load %arg5[%c0_133, %c0_134] : memref<32x128xf32, #tpu.memory_space<vmem>>, vector<32x128xf32>
    %cst_135 = arith.constant dense<0.000000e+00> : vector<64x128xf32>
    %548 = tpu.matmul %546, %547, %cst_135 {dimension_numbers = #tpu.dot_dimension_numbers<[1], [0], [0], [1], [0, 0, 1, 1], [], []>} : vector<64x32xf32>, vector<32x128xf32>, vector<64x128xf32> -> vector<64x128xf32>
    %c0_136 = arith.constant 0 : index
    %c0_137 = arith.constant 0 : index
    %549 = vector.load %arg11[%c0_136, %c0_137] : memref<64x32xf32, #tpu.memory_space<vmem>>, vector<64x32xf32>
    %c0_138 = arith.constant 0 : index
    %c0_139 = arith.constant 0 : index
    %550 = vector.load %arg6[%c0_138, %c0_139] : memref<32x128xf32, #tpu.memory_space<vmem>>, vector<32x128xf32>
    %cst_140 = arith.constant dense<0.000000e+00> : vector<64x128xf32>
    %551 = tpu.matmul %549, %550, %cst_140 {dimension_numbers = #tpu.dot_dimension_numbers<[1], [0], [0], [1], [0, 0, 1, 1], [], []>} : vector<64x32xf32>, vector<32x128xf32>, vector<64x128xf32> -> vector<64x128xf32>
    %552 = arith.addf %548, %551 : vector<64x128xf32>
    %c0_141 = arith.constant 0 : index
    %c0_142 = arith.constant 0 : index
    %553 = vector.load %arg7[%c0_141, %c0_142] : memref<1x128xf32, #tpu.memory_space<vmem>>, vector<1x128xf32>
    %554 = vector.broadcast %553 : vector<1x128xf32> to vector<64x128xf32>
    %555 = arith.addf %552, %554 : vector<64x128xf32>
    %c0_143 = arith.constant 0 : index
    %c0_144 = arith.constant 0 : index
    %556 = vector.load %arg8[%c0_143, %c0_144] : memref<64x128xf32, #tpu.memory_space<vmem>>, vector<64x128xf32>
    tpu.vector_store %arg8[%c0_143, %c0_144], %555 {strides = array<i32>} : memref<64x128xf32, #tpu.memory_space<vmem>>, vector<64x128xf32>,
    return
  }
}

</mosaic_0001>

<llo_original>
// kernel: tpu_custom_call.1
$region0: #{tpu_custom_call.1}
  #allocation0 [shape = 'u32[]', space=smem, size = 0x4, offset = 0x4, fixed_abs, tag = 'smem constant byte address 0x4 - core index']
  #allocation1 [shape = 'u32[144,128]{1,0:T(1,128)}', space=vmem, size = 0x12000, scoped, tag = 'internal scratch']
  #allocation2 [shape = 'f32[64,256]{1,0:T(8,128)}', space=vmem, size = 0x10000, scoped, tag = 'scratch operand']
  #allocation3 [shape = 'f32[64,32]{1,0:T(8,128)}', space=vmem, size = 0x8000, scoped, tag = 'scratch operand']
  #allocation4 [shape = 'f32[64,32]{1,0:T(8,128)}', space=vmem, size = 0x8000, scoped, tag = 'scratch operand']
  %s0 = inlined_call_operand.vmem [shape: f32[64,16], index: 0, kind: input, shape index: {}]
  %s1 = inlined_call_operand.vmem [shape: f32[16,256], index: 1, kind: input, shape index: {}]
  %s2 = inlined_call_operand.vmem [shape: f32[1,256], index: 2, kind: input, shape index: {}]
  %s3 = inlined_call_operand.vmem [shape: f32[32,128], index: 3, kind: input, shape index: {}]
  %s4 = inlined_call_operand.hbm [shape: f32[32,128], index: 4, kind: input, shape index: {}]
  %s5 = inlined_call_operand.vmem [shape: f32[32,128], index: 5, kind: input, shape index: {}]
  %s6 = inlined_call_operand.hbm [shape: f32[32,128], index: 6, kind: input, shape index: {}]
  %s7 = inlined_call_operand.vmem [shape: f32[1,128], index: 7, kind: input, shape index: {}]
  %s8 = inlined_call_operand.hbm [shape: f32[64,128], index: 8, kind: output, shape index: {}]
  %s9 = sld [smem:[#allocation0]]
  $region50: #{tpu_custom_call.1} parent=0
    _
  %s11 = ssub.s32 1, %s9
  %s12 = scalar_select 0, %s11, %s9
  $region1: #{tpu_custom_call.1} parent=0
    #allocation5 [shape = 'u8[16384]{0}', space=vmem, size = 0x4000, scoped, tag = 'input window, operand 4, single buffered']
    #allocation6 [shape = 's32[1]{0}', space=sflag, size = 0x4, scoped, tag = 'scoped memory for tpu_custom_call.1']
    #allocation7 [shape = 's32[1]{0}', space=sflag, size = 0x4, scoped, tag = 'scoped memory for tpu_custom_call.1']
    #allocation8 [shape = 'u8[16384]{0}', space=vmem, size = 0x4000, scoped, tag = 'input window, operand 6, single buffered']
    #allocation9 [shape = 's32[1]{0}', space=sflag, size = 0x4, scoped, tag = 'scoped memory for tpu_custom_call.1']
    #allocation10 [shape = 'u8[32768]{0}', space=vmem, size = 0x8000, scoped, tag = 'output window, operand 0, single buffered']
    %13 = vsyncpa [#allocation6], 0
    %14 = vsyncpa [#allocation9], 0
    %15 = vsyncpa [#allocation7], 0
    // Predicated region
    $region2: #{tpu_custom_call.1} parent=1 // pred_check
      _
    $region3: #{tpu_custom_call.1} parent=1 // pred_check_branch
      %17 = sbr.rel (0) target = $region5
    $region4: #{tpu_custom_call.1} parent=1 // pred_region
      _
    $region5: #{tpu_custom_call.1} parent=1 // pred_fallthru
      _
    // Predicated region
    $region6: #{tpu_custom_call.1} parent=1 // pred_check
      _
    $region7: #{tpu_custom_call.1} parent=1 // pred_check_branch
      %19 = sbr.rel (0) target = $region9
    $region8: #{tpu_custom_call.1} parent=1 // pred_region
      _
    $region9: #{tpu_custom_call.1} parent=1 // pred_fallthru
      _
    // Predicated region
    $region10: #{tpu_custom_call.1} parent=1 // pred_check
      _
    $region11: #{tpu_custom_call.1} parent=1 // pred_check_branch
      %21 = sbr.rel (0) target = $region13
    $region12: #{tpu_custom_call.1} parent=1 // pred_region
      _
    $region13: #{tpu_custom_call.1} parent=1 // pred_fallthru
      _
    // Predicated region
    $region14: #{tpu_custom_call.1} parent=1 // pred_check
      _
    $region15: #{tpu_custom_call.1} parent=1 // pred_check_branch
      %23 = sbr.rel (0) target = $region17
    $region16: #{tpu_custom_call.1} parent=1 // pred_region
      _
    $region17: #{tpu_custom_call.1} parent=1 // pred_fallthru
      _
    // Predicated region
    $region18: #{tpu_custom_call.1} parent=1 // pred_check
      _
    $region19: #{tpu_custom_call.1} parent=1 // pred_check_branch
      %25 = sbr.rel (0) target = $region21
    $region20: #{tpu_custom_call.1} parent=1 // pred_region
      %s27 = ssub.s32 512, 512
      %28 = vsyncadd [#allocation6], %s27
      %s29 = sshll.u32 [#allocation5], 4
      %s30 = int_to_ptr.vmem [resolvable:$true] %s29
      %35 = dma.hbm_to_vmem [thread:$0]  %s4, 512, %s30, [#allocation6], 128, 128, 8
    $region21: #{tpu_custom_call.1} parent=1 // pred_fallthru
      _
    // Predicated region
    $region22: #{tpu_custom_call.1} parent=1 // pred_check
      _
    $region23: #{tpu_custom_call.1} parent=1 // pred_check_branch
      %37 = sbr.rel (0) target = $region25
    $region24: #{tpu_custom_call.1} parent=1 // pred_region
      _
    $region25: #{tpu_custom_call.1} parent=1 // pred_fallthru
      _
    // Predicated region
    $region26: #{tpu_custom_call.1} parent=1 // pred_check
      _
    $region27: #{tpu_custom_call.1} parent=1 // pred_check_branch
      %39 = sbr.rel (0) target = $region29
    $region28: #{tpu_custom_call.1} parent=1 // pred_region
      %s41 = ssub.s32 512, 512
      %42 = vsyncadd [#allocation9], %s41
      %s43 = sshll.u32 [#allocation8], 4
      %s44 = int_to_ptr.vmem [resolvable:$true] %s43
      %49 = dma.hbm_to_vmem [thread:$0]  %s6, 512, %s44, [#allocation9], 128, 128, 8
    $region29: #{tpu_custom_call.1} parent=1 // pred_fallthru
      _
    // Predicated region
    $region30: #{tpu_custom_call.1} parent=1 // pred_check
      _
    $region31: #{tpu_custom_call.1} parent=1 // pred_check_branch
      %51 = sbr.rel (0) target = $region33
    $region32: #{tpu_custom_call.1} parent=1 // pred_region
      _
    $region33: #{tpu_custom_call.1} parent=1 // pred_fallthru
      _
    // Predicated region
    $region34: #{tpu_custom_call.1} parent=1 // pred_check
      _
    $region35: #{tpu_custom_call.1} parent=1 // pred_check_branch
      %53 = sbr.rel (0) target = $region37
    $region36: #{tpu_custom_call.1} parent=1 // pred_region
      %54 = dma.done [#allocation6], 512
    $region37: #{tpu_custom_call.1} parent=1 // pred_fallthru
      _
    // Predicated region
    $region38: #{tpu_custom_call.1} parent=1 // pred_check
      _
    $region39: #{tpu_custom_call.1} parent=1 // pred_check_branch
      %56 = sbr.rel (0) target = $region41
    $region40: #{tpu_custom_call.1} parent=1 // pred_region
      %57 = dma.done [#allocation9], 512
    $region41: #{tpu_custom_call.1} parent=1 // pred_fallthru
      _
    %v58 = vld [vmem:[%s0] sm:$0xff]
    %v59 = vld [vmem:[%s0 + $0x8] sm:$0xff]
    %v60 = vld [vmem:[%s0 + $0x10] sm:$0xff]
    %v61 = vld [vmem:[%s0 + $0x18] sm:$0xff]
    %v62 = vld [vmem:[%s0 + $0x20] sm:$0xff]
    %v63 = vld [vmem:[%s0 + $0x28] sm:$0xff]
    %v64 = vld [vmem:[%s0 + $0x30] sm:$0xff]
    %v65 = vld [vmem:[%s0 + $0x38] sm:$0xff]
    %v66 = vld [vmem:[%s1] sm:$0xff]
    %v67 = vld [vmem:[%s1 + $0x8] sm:$0xff]
    %v68 = vld [vmem:[%s1 + $0x10] sm:$0xff]
    %v69 = vld [vmem:[%s1 + $0x18] sm:$0xff]
    %v70 = vld [vmem:[%s2] sm:$0x3]
    %v72 = vlaneseq
    %v73 = vshrl.u32 %v72, 7
    %v74 = vsub.s32 0, %v73
    %v75 = vrot.slane %v70, %v74
    %v76 = vlaneseq
    %v77 = vshrl.u32 %v76, 7
    %v78 = vsub.s32 1, %v77
    %v79 = vrot.slane %v70, %v78
    %vm82 = vcmask 130048
    %v84 = vsel %vm82, %v58, 0
    %v87 = vsel %vm82, %v59, 0
    %v90 = vsel %vm82, %v60, 0
    %v93 = vsel %vm82, %v61, 0
    %v96 = vsel %vm82, %v62, 0
    %v99 = vsel %vm82, %v63, 0
    %v102 = vsel %vm82, %v64, 0
    %v105 = vsel %vm82, %v65, 0
    %107 = vmatprep.subr.mxu0 %v67
    %108 = vmatpush1.msra.mxu0 %v66
    %109 = vmatprep.subr.mxu0 %v69
    %110 = vmatpush1.msra.mxu0 %v68
    %111 = vmatprep.subr.mxu0 0.0
    %112 = vmatpush1.msra.mxu0 0.0
    %113 = vmatprep.subr.mxu0 0.0
    %114 = vmatpush1.msra.mxu0 0.0
    %115 = vmatprep.subr.mxu0 0.0
    %116 = vmatpush1.msra.mxu0 0.0
    %117 = vmatprep.subr.mxu0 0.0
    %118 = vmatpush1.msra.mxu0 0.0
    %119 = vmatprep.subr.mxu0 0.0
    %120 = vmatpush1.msra.mxu0 0.0
    %121 = vmatprep.subr.mxu0 0.0
    %122 = vmatpush1.msra.mxu0 0.0
    %123 = vmatprep.subr.mxu0 0.0
    %124 = vmatpush1.msra.mxu0 0.0
    %125 = vmatprep.subr.mxu0 0.0
    %126 = vmatpush1.msra.mxu0 0.0
    %127 = vmatprep.subr.mxu0 0.0
    %128 = vmatpush1.msra.mxu0 0.0
    %129 = vmatprep.subr.mxu0 0.0
    %130 = vmatpush1.msra.mxu0 0.0
    %131 = vmatprep.subr.mxu0 0.0
    %132 = vmatpush1.msra.mxu0 0.0
    %133 = vmatprep.subr.mxu0 0.0
    %134 = vmatpush1.msra.mxu0 0.0
    %135 = vmatprep.subr.mxu0 0.0
    %136 = vmatpush1.msra.mxu0 0.0
    %137 = vmatprep.subr.mxu0 0.0
    %138 = vmatpush1.msra.mxu0 0.0
    %139 = vmatprep.subr.mxu0 0.0
    %140 = vmatpush1.msra.mxu0 0.0
    %141 = vmatprep.subr.mxu0 0.0
    %142 = vmatpush1.msra.mxu0 0.0
    %143 = vmatprep.subr.mxu0 0.0
    %144 = vmatpush1.msra.mxu0 0.0
    %145 = vmatprep.subr.mxu0 0.0
    %146 = vmatpush1.msra.mxu0 0.0
    %147 = vmatprep.subr.mxu0 0.0
    %148 = vmatpush1.msra.mxu0 0.0
    %149 = vmatprep.subr.mxu0 0.0
    %150 = vmatpush1.msra.mxu0 0.0
    %151 = vmatprep.subr.mxu0 0.0
    %152 = vmatpush1.msra.mxu0 0.0
    %153 = vmatprep.subr.mxu0 0.0
    %154 = vmatpush1.msra.mxu0 0.0
    %155 = vmatprep.subr.mxu0 0.0
    %156 = vmatpush1.msra.mxu0 0.0
    %157 = vmatprep.subr.mxu0 0.0
    %158 = vmatpush1.msra.mxu0 0.0
    %159 = vmatprep.subr.mxu0 0.0
    %160 = vmatpush1.msra.mxu0 0.0
    %161 = vmatprep.subr.mxu0 0.0
    %162 = vmatpush1.msra.mxu0 0.0
    %163 = vmatprep.subr.mxu0 0.0
    %164 = vmatpush1.msra.mxu0 0.0
    %165 = vmatprep.subr.mxu0 0.0
    %166 = vmatpush1.msra.mxu0 0.0
    %167 = vmatprep.subr.mxu0 0.0
    %168 = vmatpush1.msra.mxu0 0.0
    %169 = vmatprep.subr.mxu0 0.0
    %170 = vmatpush1.msra.mxu0 0.0
    %171 = vmatprep.mubr.f32.mxu0 0.0
    %172 = vmatmul.mubr.f32.gmra.mrb[0].mxu0 %v84
    %v173 = vpop.f32.mrb[0].mxu0
    %v174 = vadd.f32 %v75, %v173
    %v175 = vpop.f32.mrb[0].mxu0
    %v176 = vadd.f32 %v79, %v175
    %177 = vmatprep.mubr.f32.mxu0 0.0
    %178 = vmatmul.mubr.f32.gmra.mrb[0].mxu0 %v87
    %v179 = vpop.f32.mrb[0].mxu0
    %v180 = vadd.f32 %v75, %v179
    %v181 = vpop.f32.mrb[0].mxu0
    %v182 = vadd.f32 %v79, %v181
    %183 = vmatprep.mubr.f32.mxu0 0.0
    %184 = vmatmul.mubr.f32.gmra.mrb[0].mxu0 %v90
    %v185 = vpop.f32.mrb[0].mxu0
    %v186 = vadd.f32 %v75, %v185
    %v187 = vpop.f32.mrb[0].mxu0
    %v188 = vadd.f32 %v79, %v187
    %189 = vmatprep.mubr.f32.mxu0 0.0
    %190 = vmatmul.mubr.f32.gmra.mrb[0].mxu0 %v93
    %v191 = vpop.f32.mrb[0].mxu0
    %v192 = vadd.f32 %v75, %v191
    %v193 = vpop.f32.mrb[0].mxu0
    %v194 = vadd.f32 %v79, %v193
    %195 = vmatprep.mubr.f32.mxu0 0.0
    %196 = vmatmul.mubr.f32.gmra.mrb[0].mxu0 %v96
    %v197 = vpop.f32.mrb[0].mxu0
    %v198 = vadd.f32 %v75, %v197
    %v199 = vpop.f32.mrb[0].mxu0
    %v200 = vadd.f32 %v79, %v199
    %201 = vmatprep.mubr.f32.mxu0 0.0
    %202 = vmatmul.mubr.f32.gmra.mrb[0].mxu0 %v99
    %v203 = vpop.f32.mrb[0].mxu0
    %v204 = vadd.f32 %v75, %v203
    %v205 = vpop.f32.mrb[0].mxu0
    %v206 = vadd.f32 %v79, %v205
    %207 = vmatprep.mubr.f32.mxu0 0.0
    %208 = vmatmul.mubr.f32.gmra.mrb[0].mxu0 %v102
    %v209 = vpop.f32.mrb[0].mxu0
    %v210 = vadd.f32 %v75, %v209
    %v211 = vpop.f32.mrb[0].mxu0
    %v212 = vadd.f32 %v79, %v211
    %213 = vmatprep.mubr.f32.mxu0 0.0
    %214 = vmatmul.mubr.f32.gmra.mrb[0].mxu0 %v105
    %v215 = vpop.f32.mrb[0].mxu0
    %v216 = vadd.f32 %v75, %v215
    %v217 = vpop.f32.mrb[0].mxu0
    %v218 = vadd.f32 %v79, %v217
    %219 = vdwg.mxu0
    %220 = vst [vmem:[#allocation2] sm:$0xff] %v174
    %221 = vst [vmem:[#allocation2 + $0x8] sm:$0xff] %v176
    %222 = vst [vmem:[#allocation2 + $0x10] sm:$0xff] %v180
    %223 = vst [vmem:[#allocation2 + $0x18] sm:$0xff] %v182
    %224 = vst [vmem:[#allocation2 + $0x20] sm:$0xff] %v186
    %225 = vst [vmem:[#allocation2 + $0x28] sm:$0xff] %v188
    %226 = vst [vmem:[#allocation2 + $0x30] sm:$0xff] %v192
    %227 = vst [vmem:[#allocation2 + $0x38] sm:$0xff] %v194
    %228 = vst [vmem:[#allocation2 + $0x40] sm:$0xff] %v198
    %229 = vst [vmem:[#allocation2 + $0x48] sm:$0xff] %v200
    %230 = vst [vmem:[#allocation2 + $0x50] sm:$0xff] %v204
    %231 = vst [vmem:[#allocation2 + $0x58] sm:$0xff] %v206
    %232 = vst [vmem:[#allocation2 + $0x60] sm:$0xff] %v210
    %233 = vst [vmem:[#allocation2 + $0x68] sm:$0xff] %v212
    %234 = vst [vmem:[#allocation2 + $0x70] sm:$0xff] %v216
    %235 = vst [vmem:[#allocation2 + $0x78] sm:$0xff] %v218
    %v236 = vld [vmem:[%s3] sm:$0xff]
    %v237 = vld [vmem:[%s3 + $0x8] sm:$0xff]
    %v238 = vld [vmem:[%s3 + $0x10] sm:$0xff]
    %v239 = vld [vmem:[%s3 + $0x18] sm:$0xff]
    %v240 = vld [vmem:[#allocation5] sm:$0xff]
    %v241 = vld [vmem:[#allocation5 + $0x8] sm:$0xff]
    %v242 = vld [vmem:[#allocation5 + $0x10] sm:$0xff]
    %v243 = vld [vmem:[#allocation5 + $0x18] sm:$0xff]
    %s244 = smul.u32 0, 2
    %s245 = smul.addr %s244, 8
    %s246 = scalar_lea.vmem [#allocation2], %s245
    %v247 = vld [vmem:[%s246] sm:$0xff]
    %s248 = smul.u32 7, 2
    %s249 = smul.addr %s248, 8
    %s250 = scalar_lea.vmem [#allocation2], %s249
    %v251 = vld [vmem:[%s250 + $0x8] sm:$0xff]
    %vm252 = vcmask 261120
    %v254 = vsel %vm252, 0.0, 0
    %256 = vmatprep.subr.mxu0 0.0
    %257 = vmatpush1.msra.mxu0 %v236
    %258 = vmatprep.subr.mxu0 0.0
    %259 = vmatpush1.msra.mxu0 %v237
    %260 = vmatprep.subr.mxu0 0.0
    %261 = vmatpush1.msra.mxu0 %v238
    %262 = vmatprep.subr.mxu0 0.0
    %263 = vmatpush1.msra.mxu0 %v239
    %264 = vmatprep.subr.mxu0 0.0
    %265 = vmatpush1.msra.mxu0 0.0
    %266 = vmatprep.subr.mxu0 0.0
    %267 = vmatpush1.msra.mxu0 0.0
    %268 = vmatprep.subr.mxu0 0.0
    %269 = vmatpush1.msra.mxu0 0.0
    %270 = vmatprep.subr.mxu0 0.0
    %271 = vmatpush1.msra.mxu0 0.0
    %272 = vmatprep.subr.mxu0 0.0
    %273 = vmatpush1.msra.mxu0 0.0
    %274 = vmatprep.subr.mxu0 0.0
    %275 = vmatpush1.msra.mxu0 0.0
    %276 = vmatprep.subr.mxu0 0.0
    %277 = vmatpush1.msra.mxu0 0.0
    %278 = vmatprep.subr.mxu0 0.0
    %279 = vmatpush1.msra.mxu0 0.0
    %280 = vmatprep.subr.mxu0 0.0
    %281 = vmatpush1.msra.mxu0 0.0
    %282 = vmatprep.subr.mxu0 0.0
    %283 = vmatpush1.msra.mxu0 0.0
    %284 = vmatprep.subr.mxu0 0.0
    %285 = vmatpush1.msra.mxu0 0.0
    %286 = vmatprep.subr.mxu0 0.0
    %287 = vmatpush1.msra.mxu0 0.0
    %288 = vmatprep.subr.mxu0 0.0
    %289 = vmatpush1.msra.mxu0 0.0
    %290 = vmatprep.subr.mxu0 0.0
    %291 = vmatpush1.msra.mxu0 0.0
    %292 = vmatprep.subr.mxu0 0.0
    %293 = vmatpush1.msra.mxu0 0.0
    %294 = vmatprep.subr.mxu0 0.0
    %295 = vmatpush1.msra.mxu0 0.0
    %296 = vmatprep.subr.mxu0 0.0
    %297 = vmatpush1.msra.mxu0 0.0
    %298 = vmatprep.subr.mxu0 0.0
    %299 = vmatpush1.msra.mxu0 0.0
    %300 = vmatprep.subr.mxu0 0.0
    %301 = vmatpush1.msra.mxu0 0.0
    %302 = vmatprep.subr.mxu0 0.0
    %303 = vmatpush1.msra.mxu0 0.0
    %304 = vmatprep.subr.mxu0 0.0
    %305 = vmatpush1.msra.mxu0 0.0
    %306 = vmatprep.subr.mxu0 0.0
    %307 = vmatpush1.msra.mxu0 0.0
    %308 = vmatprep.subr.mxu0 0.0
    %309 = vmatpush1.msra.mxu0 0.0
    %310 = vmatprep.subr.mxu0 0.0
    %311 = vmatpush1.msra.mxu0 0.0
    %312 = vmatprep.subr.mxu0 0.0
    %313 = vmatpush1.msra.mxu0 0.0
    %314 = vmatprep.subr.mxu0 0.0
    %315 = vmatpush1.msra.mxu0 0.0
    %316 = vmatprep.subr.mxu0 0.0
    %317 = vmatpush1.msra.mxu0 0.0
    %318 = vmatprep.subr.mxu0 0.0
    %319 = vmatpush1.msra.mxu0 0.0
    %320 = vmatprep.mubr.f32.mxu0 0.0
    %321 = vmatmul.mubr.f32.gmra.mrb[0].mxu0 %v254
    %v322 = vpop.f32.mrb[0].mxu0
    %v323 = vadd.f32 0.0, %v322
    %v324 = vpop.f32.mrb[0].mxu0
    %325 = vdwg.mxu0
    %v326 = vadd.f32 %v247, %v323
    %v327 = vxor.u32 %v326, 2147483648
    %v328 = vmul.f32 %v327, 1.442695
    %v329 = vpow.pop %v328
    %v330 = vadd.f32 %v329, 1.0
    %v331 = vrcp.pop %v330
    %v332 = vmul.f32 1.0, %v331
    %v333 = vtanh.pop %v326
    %v334 = vmul.f32 %v332, 0.0
    %336 = vrot.lane.b32.xlu0 %v333, 64
    %v337 = vpop.permute.xlu0 %336
    %v339 = vmul.f32 %v332, %v337
    %341 = vrot.lane.b32.xlu0 %v339, 32
    %v342 = vpop.permute.xlu0 %341
    %v344 = vadd.f32 %v334, %v342
    %v345 = vtanh.pop %v344
    %347 = vrot.lane.b32.xlu0 %v345, 64
    %v348 = vpop.permute.xlu0 %347
    %v350 = vmul.f32 %v332, %v348
    %351 = vmatprep.subr.mxu0 0.0
    %352 = vmatpush1.msra.mxu0 %v240
    %353 = vmatprep.subr.mxu0 0.0
    %354 = vmatpush1.msra.mxu0 %v241
    %355 = vmatprep.subr.mxu0 0.0
    %356 = vmatpush1.msra.mxu0 %v242
    %357 = vmatprep.subr.mxu0 0.0
    %358 = vmatpush1.msra.mxu0 %v243
    %359 = vmatprep.subr.mxu0 0.0
    %360 = vmatpush1.msra.mxu0 0.0
    %361 = vmatprep.subr.mxu0 0.0
    %362 = vmatpush1.msra.mxu0 0.0
    %363 = vmatprep.subr.mxu0 0.0
    %364 = vmatpush1.msra.mxu0 0.0
    %365 = vmatprep.subr.mxu0 0.0
    %366 = vmatpush1.msra.mxu0 0.0
    %367 = vmatprep.subr.mxu0 0.0
    %368 = vmatpush1.msra.mxu0 0.0
    %369 = vmatprep.subr.mxu0 0.0
    %370 = vmatpush1.msra.mxu0 0.0
    %371 = vmatprep.subr.mxu0 0.0
    %372 = vmatpush1.msra.mxu0 0.0
    %373 = vmatprep.subr.mxu0 0.0
    %374 = vmatpush1.msra.mxu0 0.0
    %375 = vmatprep.subr.mxu0 0.0
    %376 = vmatpush1.msra.mxu0 0.0
    %377 = vmatprep.subr.mxu0 0.0
    %378 = vmatpush1.msra.mxu0 0.0
    %379 = vmatprep.subr.mxu0 0.0
    %380 = vmatpush1.msra.mxu0 0.0
    %381 = vmatprep.subr.mxu0 0.0
    %382 = vmatpush1.msra.mxu0 0.0
    %383 = vmatprep.subr.mxu0 0.0
    %384 = vmatpush1.msra.mxu0 0.0
    %385 = vmatprep.subr.mxu0 0.0
    %386 = vmatpush1.msra.mxu0 0.0
    %387 = vmatprep.subr.mxu0 0.0
    %388 = vmatpush1.msra.mxu0 0.0
    %389 = vmatprep.subr.mxu0 0.0
    %390 = vmatpush1.msra.mxu0 0.0
    %391 = vmatprep.subr.mxu0 0.0
    %392 = vmatpush1.msra.mxu0 0.0
    %393 = vmatprep.subr.mxu0 0.0
    %394 = vmatpush1.msra.mxu0 0.0
    %395 = vmatprep.subr.mxu0 0.0
    %396 = vmatpush1.msra.mxu0 0.0
    %397 = vmatprep.subr.mxu0 0.0
    %398 = vmatpush1.msra.mxu0 0.0
    %399 = vmatprep.subr.mxu0 0.0
    %400 = vmatpush1.msra.mxu0 0.0
    %401 = vmatprep.subr.mxu0 0.0
    %402 = vmatpush1.msra.mxu0 0.0
    %403 = vmatprep.subr.mxu0 0.0
    %404 = vmatpush1.msra.mxu0 0.0
    %405 = vmatprep.subr.mxu0 0.0
    %406 = vmatpush1.msra.mxu0 0.0
    %407 = vmatprep.subr.mxu0 0.0
    %408 = vmatpush1.msra.mxu0 0.0
    %409 = vmatprep.subr.mxu0 0.0
    %410 = vmatpush1.msra.mxu0 0.0
    %411 = vmatprep.subr.mxu0 0.0
    %412 = vmatpush1.msra.mxu0 0.0
    %413 = vmatprep.subr.mxu0 0.0
    %414 = vmatpush1.msra.mxu0 0.0
    %415 = vmatprep.mubr.f32.mxu0 0.0
    %416 = vmatmul.mubr.f32.gmra.mrb[0].mxu0 %v254
    %v417 = vpop.f32.mrb[0].mxu0
    %v418 = vadd.f32 0.0, %v417
    %v419 = vpop.f32.mrb[0].mxu0
    %420 = vdwg.mxu0
    %v421 = vadd.f32 %v251, %v418
    %v422 = vxor.u32 %v421, 2147483648
    %v423 = vmul.f32 %v422, 1.442695
    %v424 = vpow.pop %v423
    %v425 = vadd.f32 %v424, 1.0
    %v426 = vrcp.pop %v425
    %v427 = vmul.f32 1.0, %v426
    %v428 = vtanh.pop %v421
    %v429 = vmul.f32 %v427, 0.0
    %431 = vrot.lane.b32.xlu0 %v428, 64
    %v432 = vpop.permute.xlu0 %431
    %v434 = vmul.f32 %v427, %v432
    %436 = vrot.lane.b32.xlu0 %v434, 32
    %v437 = vpop.permute.xlu0 %436
    %v439 = vadd.f32 %v429, %v437
    %v440 = vtanh.pop %v439
    %442 = vrot.lane.b32.xlu0 %v440, 64
    %v443 = vpop.permute.xlu0 %442
    %v445 = vmul.f32 %v427, %v443
    %447 = vrot.lane.b32.xlu0 %v350, 32
    %v448 = vpop.permute.xlu0 %447
    %450 = vst.msk [vmem:[#allocation3] sm:$0xff] %vm252, %v448
    %452 = vrot.lane.b32.xlu0 %v445, 32
    %v453 = vpop.permute.xlu0 %452
    %s455 = scalar_lea.vmem [#allocation4], 56
    %456 = vst.msk [vmem:[%s455] sm:$0xff] %vm252, %v453
    %s457 = smul.u32 1, 2
    %s458 = smul.addr %s457, 8
    %s459 = scalar_lea.vmem [#allocation2], %s458
    %v460 = vld [vmem:[%s459] sm:$0xff]
    %s461 = smul.u32 6, 2
    %s462 = smul.addr %s461, 8
    %s463 = scalar_lea.vmem [#allocation2], %s462
    %v464 = vld [vmem:[%s463 + $0x8] sm:$0xff]
    %v465 = vsel %vm252, %v448, 0
    %467 = vmatprep.subr.mxu0 0.0
    %468 = vmatpush1.msra.mxu0 %v236
    %469 = vmatprep.subr.mxu0 0.0
    %470 = vmatpush1.msra.mxu0 %v237
    %471 = vmatprep.subr.mxu0 0.0
    %472 = vmatpush1.msra.mxu0 %v238
    %473 = vmatprep.subr.mxu0 0.0
    %474 = vmatpush1.msra.mxu0 %v239
    %475 = vmatprep.subr.mxu0 0.0
    %476 = vmatpush1.msra.mxu0 0.0
    %477 = vmatprep.subr.mxu0 0.0
    %478 = vmatpush1.msra.mxu0 0.0
    %479 = vmatprep.subr.mxu0 0.0
    %480 = vmatpush1.msra.mxu0 0.0
    %481 = vmatprep.subr.mxu0 0.0
    %482 = vmatpush1.msra.mxu0 0.0
    %483 = vmatprep.subr.mxu0 0.0
    %484 = vmatpush1.msra.mxu0 0.0
    %485 = vmatprep.subr.mxu0 0.0
    %486 = vmatpush1.msra.mxu0 0.0
    %487 = vmatprep.subr.mxu0 0.0
    %488 = vmatpush1.msra.mxu0 0.0
    %489 = vmatprep.subr.mxu0 0.0
    %490 = vmatpush1.msra.mxu0 0.0
    %491 = vmatprep.subr.mxu0 0.0
    %492 = vmatpush1.msra.mxu0 0.0
    %493 = vmatprep.subr.mxu0 0.0
    %494 = vmatpush1.msra.mxu0 0.0
    %495 = vmatprep.subr.mxu0 0.0
    %496 = vmatpush1.msra.mxu0 0.0
    %497 = vmatprep.subr.mxu0 0.0
    %498 = vmatpush1.msra.mxu0 0.0
    %499 = vmatprep.subr.mxu0 0.0
    %500 = vmatpush1.msra.mxu0 0.0
    %501 = vmatprep.subr.mxu0 0.0
    %502 = vmatpush1.msra.mxu0 0.0
    %503 = vmatprep.subr.mxu0 0.0
    %504 = vmatpush1.msra.mxu0 0.0
    %505 = vmatprep.subr.mxu0 0.0
    %506 = vmatpush1.msra.mxu0 0.0
    %507 = vmatprep.subr.mxu0 0.0
    %508 = vmatpush1.msra.mxu0 0.0
    %509 = vmatprep.subr.mxu0 0.0
    %510 = vmatpush1.msra.mxu0 0.0
    %511 = vmatprep.subr.mxu0 0.0
    %512 = vmatpush1.msra.mxu0 0.0
    %513 = vmatprep.subr.mxu0 0.0
    %514 = vmatpush1.msra.mxu0 0.0
    %515 = vmatprep.subr.mxu0 0.0
    %516 = vmatpush1.msra.mxu0 0.0
    %517 = vmatprep.subr.mxu0 0.0
    %518 = vmatpush1.msra.mxu0 0.0
    %519 = vmatprep.subr.mxu0 0.0
    %520 = vmatpush1.msra.mxu0 0.0
    %521 = vmatprep.subr.mxu0 0.0
    %522 = vmatpush1.msra.mxu0 0.0
    %523 = vmatprep.subr.mxu0 0.0
    %524 = vmatpush1.msra.mxu0 0.0
    %525 = vmatprep.subr.mxu0 0.0
    %526 = vmatpush1.msra.mxu0 0.0
    %527 = vmatprep.subr.mxu0 0.0
    %528 = vmatpush1.msra.mxu0 0.0
    %529 = vmatprep.subr.mxu0 0.0
    %530 = vmatpush1.msra.mxu0 0.0
    %531 = vmatprep.mubr.f32.mxu0 0.0
    %532 = vmatmul.mubr.f32.gmra.mrb[0].mxu0 %v465
    %v533 = vpop.f32.mrb[0].mxu0
    %v534 = vadd.f32 0.0, %v533
    %v535 = vpop.f32.mrb[0].mxu0
    %536 = vdwg.mxu0
    %v537 = vadd.f32 %v460, %v534
    %v538 = vxor.u32 %v537, 2147483648
    %v539 = vmul.f32 %v538, 1.442695
    %v540 = vpow.pop %v539
    %v541 = vadd.f32 %v540, 1.0
    %v542 = vrcp.pop %v541
    %v543 = vmul.f32 1.0, %v542
    %v544 = vtanh.pop %v537
    %v545 = vmul.f32 %v543, %v344
    %547 = vrot.lane.b32.xlu0 %v544, 64
    %v548 = vpop.permute.xlu0 %547
    %v550 = vmul.f32 %v543, %v548
    %552 = vrot.lane.b32.xlu0 %v550, 32
    %v553 = vpop.permute.xlu0 %552
    %v555 = vadd.f32 %v545, %v553
    %v556 = vtanh.pop %v555
    %558 = vrot.lane.b32.xlu0 %v556, 64
    %v559 = vpop.permute.xlu0 %558
    %v561 = vmul.f32 %v543, %v559
    %v562 = vsel %vm252, %v453, 0
    %564 = vmatprep.subr.mxu0 0.0
    %565 = vmatpush1.msra.mxu0 %v240
    %566 = vmatprep.subr.mxu0 0.0
    %567 = vmatpush1.msra.mxu0 %v241
    %568 = vmatprep.subr.mxu0 0.0
    %569 = vmatpush1.msra.mxu0 %v242
    %570 = vmatprep.subr.mxu0 0.0
    %571 = vmatpush1.msra.mxu0 %v243
    %572 = vmatprep.subr.mxu0 0.0
    %573 = vmatpush1.msra.mxu0 0.0
    %574 = vmatprep.subr.mxu0 0.0
    %575 = vmatpush1.msra.mxu0 0.0
    %576 = vmatprep.subr.mxu0 0.0
    %577 = vmatpush1.msra.mxu0 0.0
    %578 = vmatprep.subr.mxu0 0.0
    %579 = vmatpush1.msra.mxu0 0.0
    %580 = vmatprep.subr.mxu0 0.0
    %581 = vmatpush1.msra.mxu0 0.0
    %582 = vmatprep.subr.mxu0 0.0
    %583 = vmatpush1.msra.mxu0 0.0
    %584 = vmatprep.subr.mxu0 0.0
    %585 = vmatpush1.msra.mxu0 0.0
    %586 = vmatprep.subr.mxu0 0.0
    %587 = vmatpush1.msra.mxu0 0.0
    %588 = vmatprep.subr.mxu0 0.0
    %589 = vmatpush1.msra.mxu0 0.0
    %590 = vmatprep.subr.mxu0 0.0
    %591 = vmatpush1.msra.mxu0 0.0
    %592 = vmatprep.subr.mxu0 0.0
    %593 = vmatpush1.msra.mxu0 0.0
    %594 = vmatprep.subr.mxu0 0.0
    %595 = vmatpush1.msra.mxu0 0.0
    %596 = vmatprep.subr.mxu0 0.0
    %597 = vmatpush1.msra.mxu0 0.0
    %598 = vmatprep.subr.mxu0 0.0
    %599 = vmatpush1.msra.mxu0 0.0
    %600 = vmatprep.subr.mxu0 0.0
    %601 = vmatpush1.msra.mxu0 0.0
    %602 = vmatprep.subr.mxu0 0.0
    %603 = vmatpush1.msra.mxu0 0.0
    %604 = vmatprep.subr.mxu0 0.0
    %605 = vmatpush1.msra.mxu0 0.0
    %606 = vmatprep.subr.mxu0 0.0
    %607 = vmatpush1.msra.mxu0 0.0
    %608 = vmatprep.subr.mxu0 0.0
    %609 = vmatpush1.msra.mxu0 0.0
    %610 = vmatprep.subr.mxu0 0.0
    %611 = vmatpush1.msra.mxu0 0.0
    %612 = vmatprep.subr.mxu0 0.0
    %613 = vmatpush1.msra.mxu0 0.0
    %614 = vmatprep.subr.mxu0 0.0
    %615 = vmatpush1.msra.mxu0 0.0
    %616 = vmatprep.subr.mxu0 0.0
    %617 = vmatpush1.msra.mxu0 0.0
    %618 = vmatprep.subr.mxu0 0.0
    %619 = vmatpush1.msra.mxu0 0.0
    %620 = vmatprep.subr.mxu0 0.0
    %621 = vmatpush1.msra.mxu0 0.0
    %622 = vmatprep.subr.mxu0 0.0
    %623 = vmatpush1.msra.mxu0 0.0
    %624 = vmatprep.subr.mxu0 0.0
    %625 = vmatpush1.msra.mxu0 0.0
    %626 = vmatprep.subr.mxu0 0.0
    %627 = vmatpush1.msra.mxu0 0.0
    %628 = vmatprep.mubr.f32.mxu0 0.0
    %629 = vmatmul.mubr.f32.gmra.mrb[0].mxu0 %v562
    %v630 = vpop.f32.mrb[0].mxu0
    %v631 = vadd.f32 0.0, %v630
    %v632 = vpop.f32.mrb[0].mxu0
    %633 = vdwg.mxu0
    %v634 = vadd.f32 %v464, %v631
    %v635 = vxor.u32 %v634, 2147483648
    %v636 = vmul.f32 %v635, 1.442695
    %v637 = vpow.pop %v636
    %v638 = vadd.f32 %v637, 1.0
    %v639 = vrcp.pop %v638
    %v640 = vmul.f32 1.0, %v639
    %v641 = vtanh.pop %v634
    %v642 = vmul.f32 %v640, %v439
    %644 = vrot.lane.b32.xlu0 %v641, 64
    %v645 = vpop.permute.xlu0 %644
    %v647 = vmul.f32 %v640, %v645
    %649 = vrot.lane.b32.xlu0 %v647, 32
    %v650 = vpop.permute.xlu0 %649
    %v652 = vadd.f32 %v642, %v650
    %v653 = vtanh.pop %v652
    %655 = vrot.lane.b32.xlu0 %v653, 64
    %v656 = vpop.permute.xlu0 %655
    %v658 = vmul.f32 %v640, %v656
    %660 = vrot.lane.b32.xlu0 %v561, 32
    %v661 = vpop.permute.xlu0 %660
    %s663 = scalar_lea.vmem [#allocation3], 8
    %664 = vst.msk [vmem:[%s663] sm:$0xff] %vm252, %v661
    %666 = vrot.lane.b32.xlu0 %v658, 32
    %v667 = vpop.permute.xlu0 %666
    %s669 = scalar_lea.vmem [#allocation4], 48
    %670 = vst.msk [vmem:[%s669] sm:$0xff] %vm252, %v667
    %s671 = smul.u32 2, 2
    %s672 = smul.addr %s671, 8
    %s673 = scalar_lea.vmem [#allocation2], %s672
    %v674 = vld [vmem:[%s673] sm:$0xff]
    %s675 = smul.u32 5, 2
    %s676 = smul.addr %s675, 8
    %s677 = scalar_lea.vmem [#allocation2], %s676
    %v678 = vld [vmem:[%s677 + $0x8] sm:$0xff]
    %v679 = vsel %vm252, %v661, 0
    %681 = vmatprep.subr.mxu0 0.0
    %682 = vmatpush1.msra.mxu0 %v236
    %683 = vmatprep.subr.mxu0 0.0
    %684 = vmatpush1.msra.mxu0 %v237
    %685 = vmatprep.subr.mxu0 0.0
    %686 = vmatpush1.msra.mxu0 %v238
    %687 = vmatprep.subr.mxu0 0.0
    %688 = vmatpush1.msra.mxu0 %v239
    %689 = vmatprep.subr.mxu0 0.0
    %690 = vmatpush1.msra.mxu0 0.0
    %691 = vmatprep.subr.mxu0 0.0
    %692 = vmatpush1.msra.mxu0 0.0
    %693 = vmatprep.subr.mxu0 0.0
    %694 = vmatpush1.msra.mxu0 0.0
    %695 = vmatprep.subr.mxu0 0.0
    %696 = vmatpush1.msra.mxu0 0.0
    %697 = vmatprep.subr.mxu0 0.0
    %698 = vmatpush1.msra.mxu0 0.0
    %699 = vmatprep.subr.mxu0 0.0
    %700 = vmatpush1.msra.mxu0 0.0
    %701 = vmatprep.subr.mxu0 0.0
    %702 = vmatpush1.msra.mxu0 0.0
    %703 = vmatprep.subr.mxu0 0.0
    %704 = vmatpush1.msra.mxu0 0.0
    %705 = vmatprep.subr.mxu0 0.0
    %706 = vmatpush1.msra.mxu0 0.0
    %707 = vmatprep.subr.mxu0 0.0
    %708 = vmatpush1.msra.mxu0 0.0
    %709 = vmatprep.subr.mxu0 0.0
    %710 = vmatpush1.msra.mxu0 0.0
    %711 = vmatprep.subr.mxu0 0.0
    %712 = vmatpush1.msra.mxu0 0.0
    %713 = vmatprep.subr.mxu0 0.0
    %714 = vmatpush1.msra.mxu0 0.0
    %715 = vmatprep.subr.mxu0 0.0
    %716 = vmatpush1.msra.mxu0 0.0
    %717 = vmatprep.subr.mxu0 0.0
    %718 = vmatpush1.msra.mxu0 0.0
    %719 = vmatprep.subr.mxu0 0.0
    %720 = vmatpush1.msra.mxu0 0.0
    %721 = vmatprep.subr.mxu0 0.0
    %722 = vmatpush1.msra.mxu0 0.0
    %723 = vmatprep.subr.mxu0 0.0
    %724 = vmatpush1.msra.mxu0 0.0
    %725 = vmatprep.subr.mxu0 0.0
    %726 = vmatpush1.msra.mxu0 0.0
    %727 = vmatprep.subr.mxu0 0.0
    %728 = vmatpush1.msra.mxu0 0.0
    %729 = vmatprep.subr.mxu0 0.0
    %730 = vmatpush1.msra.mxu0 0.0
    %731 = vmatprep.subr.mxu0 0.0
    %732 = vmatpush1.msra.mxu0 0.0
    %733 = vmatprep.subr.mxu0 0.0
    %734 = vmatpush1.msra.mxu0 0.0
    %735 = vmatprep.subr.mxu0 0.0
    %736 = vmatpush1.msra.mxu0 0.0
    %737 = vmatprep.subr.mxu0 0.0
    %738 = vmatpush1.msra.mxu0 0.0
    %739 = vmatprep.subr.mxu0 0.0
    %740 = vmatpush1.msra.mxu0 0.0
    %741 = vmatprep.subr.mxu0 0.0
    %742 = vmatpush1.msra.mxu0 0.0
    %743 = vmatprep.subr.mxu0 0.0
    %744 = vmatpush1.msra.mxu0 0.0
    %745 = vmatprep.mubr.f32.mxu0 0.0
    %746 = vmatmul.mubr.f32.gmra.mrb[0].mxu0 %v679
    %v747 = vpop.f32.mrb[0].mxu0
    %v748 = vadd.f32 0.0, %v747
    %v749 = vpop.f32.mrb[0].mxu0
    %750 = vdwg.mxu0
    %v751 = vadd.f32 %v674, %v748
    %v752 = vxor.u32 %v751, 2147483648
    %v753 = vmul.f32 %v752, 1.442695
    %v754 = vpow.pop %v753
    %v755 = vadd.f32 %v754, 1.0
    %v756 = vrcp.pop %v755
    %v757 = vmul.f32 1.0, %v756
    %v758 = vtanh.pop %v751
    %v759 = vmul.f32 %v757, %v555
    %761 = vrot.lane.b32.xlu0 %v758, 64
    %v762 = vpop.permute.xlu0 %761
    %v764 = vmul.f32 %v757, %v762
    %766 = vrot.lane.b32.xlu0 %v764, 32
    %v767 = vpop.permute.xlu0 %766
    %v769 = vadd.f32 %v759, %v767
    %v770 = vtanh.pop %v769
    %772 = vrot.lane.b32.xlu0 %v770, 64
    %v773 = vpop.permute.xlu0 %772
    %v775 = vmul.f32 %v757, %v773
    %v776 = vsel %vm252, %v667, 0
    %778 = vmatprep.subr.mxu0 0.0
    %779 = vmatpush1.msra.mxu0 %v240
    %780 = vmatprep.subr.mxu0 0.0
    %781 = vmatpush1.msra.mxu0 %v241
    %782 = vmatprep.subr.mxu0 0.0
    %783 = vmatpush1.msra.mxu0 %v242
    %784 = vmatprep.subr.mxu0 0.0
    %785 = vmatpush1.msra.mxu0 %v243
    %786 = vmatprep.subr.mxu0 0.0
    %787 = vmatpush1.msra.mxu0 0.0
    %788 = vmatprep.subr.mxu0 0.0
    %789 = vmatpush1.msra.mxu0 0.0
    %790 = vmatprep.subr.mxu0 0.0
    %791 = vmatpush1.msra.mxu0 0.0
    %792 = vmatprep.subr.mxu0 0.0
    %793 = vmatpush1.msra.mxu0 0.0
    %794 = vmatprep.subr.mxu0 0.0
    %795 = vmatpush1.msra.mxu0 0.0
    %796 = vmatprep.subr.mxu0 0.0
    %797 = vmatpush1.msra.mxu0 0.0
    %798 = vmatprep.subr.mxu0 0.0
    %799 = vmatpush1.msra.mxu0 0.0
    %800 = vmatprep.subr.mxu0 0.0
    %801 = vmatpush1.msra.mxu0 0.0
    %802 = vmatprep.subr.mxu0 0.0
    %803 = vmatpush1.msra.mxu0 0.0
    %804 = vmatprep.subr.mxu0 0.0
    %805 = vmatpush1.msra.mxu0 0.0
    %806 = vmatprep.subr.mxu0 0.0
    %807 = vmatpush1.msra.mxu0 0.0
    %808 = vmatprep.subr.mxu0 0.0
    %809 = vmatpush1.msra.mxu0 0.0
    %810 = vmatprep.subr.mxu0 0.0
    %811 = vmatpush1.msra.mxu0 0.0
    %812 = vmatprep.subr.mxu0 0.0
    %813 = vmatpush1.msra.mxu0 0.0
    %814 = vmatprep.subr.mxu0 0.0
    %815 = vmatpush1.msra.mxu0 0.0
    %816 = vmatprep.subr.mxu0 0.0
    %817 = vmatpush1.msra.mxu0 0.0
    %818 = vmatprep.subr.mxu0 0.0
    %819 = vmatpush1.msra.mxu0 0.0
    %820 = vmatprep.subr.mxu0 0.0
    %821 = vmatpush1.msra.mxu0 0.0
    %822 = vmatprep.subr.mxu0 0.0
    %823 = vmatpush1.msra.mxu0 0.0
    %824 = vmatprep.subr.mxu0 0.0
    %825 = vmatpush1.msra.mxu0 0.0
    %826 = vmatprep.subr.mxu0 0.0
    %827 = vmatpush1.msra.mxu0 0.0
    %828 = vmatprep.subr.mxu0 0.0
    %829 = vmatpush1.msra.mxu0 0.0
    %830 = vmatprep.subr.mxu0 0.0
    %831 = vmatpush1.msra.mxu0 0.0
    %832 = vmatprep.subr.mxu0 0.0
    %833 = vmatpush1.msra.mxu0 0.0
    %834 = vmatprep.subr.mxu0 0.0
    %835 = vmatpush1.msra.mxu0 0.0
    %836 = vmatprep.subr.mxu0 0.0
    %837 = vmatpush1.msra.mxu0 0.0
    %838 = vmatprep.subr.mxu0 0.0
    %839 = vmatpush1.msra.mxu0 0.0
    %840 = vmatprep.subr.mxu0 0.0
    %841 = vmatpush1.msra.mxu0 0.0
    %842 = vmatprep.mubr.f32.mxu0 0.0
    %843 = vmatmul.mubr.f32.gmra.mrb[0].mxu0 %v776
    %v844 = vpop.f32.mrb[0].mxu0
    %v845 = vadd.f32 0.0, %v844
    %v846 = vpop.f32.mrb[0].mxu0
    %847 = vdwg.mxu0
    %v848 = vadd.f32 %v678, %v845
    %v849 = vxor.u32 %v848, 2147483648
    %v850 = vmul.f32 %v849, 1.442695
    %v851 = vpow.pop %v850
    %v852 = vadd.f32 %v851, 1.0
    %v853 = vrcp.pop %v852
    %v854 = vmul.f32 1.0, %v853
    %v855 = vtanh.pop %v848
    %v856 = vmul.f32 %v854, %v652
    %858 = vrot.lane.b32.xlu0 %v855, 64
    %v859 = vpop.permute.xlu0 %858
    %v861 = vmul.f32 %v854, %v859
    %863 = vrot.lane.b32.xlu0 %v861, 32
    %v864 = vpop.permute.xlu0 %863
    %v866 = vadd.f32 %v856, %v864
    %v867 = vtanh.pop %v866
    %869 = vrot.lane.b32.xlu0 %v867, 64
    %v870 = vpop.permute.xlu0 %869
    %v872 = vmul.f32 %v854, %v870
    %874 = vrot.lane.b32.xlu0 %v775, 32
    %v875 = vpop.permute.xlu0 %874
    %s877 = scalar_lea.vmem [#allocation3], 16
    %878 = vst.msk [vmem:[%s877] sm:$0xff] %vm252, %v875
    %880 = vrot.lane.b32.xlu0 %v872, 32
    %v881 = vpop.permute.xlu0 %880
    %s883 = scalar_lea.vmem [#allocation4], 40
    %884 = vst.msk [vmem:[%s883] sm:$0xff] %vm252, %v881
    %s885 = smul.u32 3, 2
    %s886 = smul.addr %s885, 8
    %s887 = scalar_lea.vmem [#allocation2], %s886
    %v888 = vld [vmem:[%s887] sm:$0xff]
    %s889 = smul.u32 4, 2
    %s890 = smul.addr %s889, 8
    %s891 = scalar_lea.vmem [#allocation2], %s890
    %v892 = vld [vmem:[%s891 + $0x8] sm:$0xff]
    %v893 = vsel %vm252, %v875, 0
    %895 = vmatprep.subr.mxu0 0.0
    %896 = vmatpush1.msra.mxu0 %v236
    %897 = vmatprep.subr.mxu0 0.0
    %898 = vmatpush1.msra.mxu0 %v237
    %899 = vmatprep.subr.mxu0 0.0
    %900 = vmatpush1.msra.mxu0 %v238
    %901 = vmatprep.subr.mxu0 0.0
    %902 = vmatpush1.msra.mxu0 %v239
    %903 = vmatprep.subr.mxu0 0.0
    %904 = vmatpush1.msra.mxu0 0.0
    %905 = vmatprep.subr.mxu0 0.0
    %906 = vmatpush1.msra.mxu0 0.0
    %907 = vmatprep.subr.mxu0 0.0
    %908 = vmatpush1.msra.mxu0 0.0
    %909 = vmatprep.subr.mxu0 0.0
    %910 = vmatpush1.msra.mxu0 0.0
    %911 = vmatprep.subr.mxu0 0.0
    %912 = vmatpush1.msra.mxu0 0.0
    %913 = vmatprep.subr.mxu0 0.0
    %914 = vmatpush1.msra.mxu0 0.0
    %915 = vmatprep.subr.mxu0 0.0
    %916 = vmatpush1.msra.mxu0 0.0
    %917 = vmatprep.subr.mxu0 0.0
    %918 = vmatpush1.msra.mxu0 0.0
    %919 = vmatprep.subr.mxu0 0.0
    %920 = vmatpush1.msra.mxu0 0.0
    %921 = vmatprep.subr.mxu0 0.0
    %922 = vmatpush1.msra.mxu0 0.0
    %923 = vmatprep.subr.mxu0 0.0
    %924 = vmatpush1.msra.mxu0 0.0
    %925 = vmatprep.subr.mxu0 0.0
    %926 = vmatpush1.msra.mxu0 0.0
    %927 = vmatprep.subr.mxu0 0.0
    %928 = vmatpush1.msra.mxu0 0.0
    %929 = vmatprep.subr.mxu0 0.0
    %930 = vmatpush1.msra.mxu0 0.0
    %931 = vmatprep.subr.mxu0 0.0
    %932 = vmatpush1.msra.mxu0 0.0
    %933 = vmatprep.subr.mxu0 0.0
    %934 = vmatpush1.msra.mxu0 0.0
    %935 = vmatprep.subr.mxu0 0.0
    %936 = vmatpush1.msra.mxu0 0.0
    %937 = vmatprep.subr.mxu0 0.0
    %938 = vmatpush1.msra.mxu0 0.0
    %939 = vmatprep.subr.mxu0 0.0
    %940 = vmatpush1.msra.mxu0 0.0
    %941 = vmatprep.subr.mxu0 0.0
    %942 = vmatpush1.msra.mxu0 0.0
    %943 = vmatprep.subr.mxu0 0.0
    %944 = vmatpush1.msra.mxu0 0.0
    %945 = vmatprep.subr.mxu0 0.0
    %946 = vmatpush1.msra.mxu0 0.0
    %947 = vmatprep.subr.mxu0 0.0
    %948 = vmatpush1.msra.mxu0 0.0
    %949 = vmatprep.subr.mxu0 0.0
    %950 = vmatpush1.msra.mxu0 0.0
    %951 = vmatprep.subr.mxu0 0.0
    %952 = vmatpush1.msra.mxu0 0.0
    %953 = vmatprep.subr.mxu0 0.0
    %954 = vmatpush1.msra.mxu0 0.0
    %955 = vmatprep.subr.mxu0 0.0
    %956 = vmatpush1.msra.mxu0 0.0
    %957 = vmatprep.subr.mxu0 0.0
    %958 = vmatpush1.msra.mxu0 0.0
    %959 = vmatprep.mubr.f32.mxu0 0.0
    %960 = vmatmul.mubr.f32.gmra.mrb[0].mxu0 %v893
    %v961 = vpop.f32.mrb[0].mxu0
    %v962 = vadd.f32 0.0, %v961
    %v963 = vpop.f32.mrb[0].mxu0
    %964 = vdwg.mxu0
    %v965 = vadd.f32 %v888, %v962
    %v966 = vxor.u32 %v965, 2147483648
    %v967 = vmul.f32 %v966, 1.442695
    %v968 = vpow.pop %v967
    %v969 = vadd.f32 %v968, 1.0
    %v970 = vrcp.pop %v969
    %v971 = vmul.f32 1.0, %v970
    %v972 = vtanh.pop %v965
    %v973 = vmul.f32 %v971, %v769
    %975 = vrot.lane.b32.xlu0 %v972, 64
    %v976 = vpop.permute.xlu0 %975
    %v978 = vmul.f32 %v971, %v976
    %980 = vrot.lane.b32.xlu0 %v978, 32
    %v981 = vpop.permute.xlu0 %980
    %v983 = vadd.f32 %v973, %v981
    %v984 = vtanh.pop %v983
    %986 = vrot.lane.b32.xlu0 %v984, 64
    %v987 = vpop.permute.xlu0 %986
    %v989 = vmul.f32 %v971, %v987
    %v990 = vsel %vm252, %v881, 0
    %992 = vmatprep.subr.mxu0 0.0
    %993 = vmatpush1.msra.mxu0 %v240
    %994 = vmatprep.subr.mxu0 0.0
    %995 = vmatpush1.msra.mxu0 %v241
    %996 = vmatprep.subr.mxu0 0.0
    %997 = vmatpush1.msra.mxu0 %v242
    %998 = vmatprep.subr.mxu0 0.0
    %999 = vmatpush1.msra.mxu0 %v243
    %1000 = vmatprep.subr.mxu0 0.0
    %1001 = vmatpush1.msra.mxu0 0.0
    %1002 = vmatprep.subr.mxu0 0.0
    %1003 = vmatpush1.msra.mxu0 0.0
    %1004 = vmatprep.subr.mxu0 0.0
    %1005 = vmatpush1.msra.mxu0 0.0
    %1006 = vmatprep.subr.mxu0 0.0
    %1007 = vmatpush1.msra.mxu0 0.0
    %1008 = vmatprep.subr.mxu0 0.0
    %1009 = vmatpush1.msra.mxu0 0.0
    %1010 = vmatprep.subr.mxu0 0.0
    %1011 = vmatpush1.msra.mxu0 0.0
    %1012 = vmatprep.subr.mxu0 0.0
    %1013 = vmatpush1.msra.mxu0 0.0
    %1014 = vmatprep.subr.mxu0 0.0
    %1015 = vmatpush1.msra.mxu0 0.0
    %1016 = vmatprep.subr.mxu0 0.0
    %1017 = vmatpush1.msra.mxu0 0.0
    %1018 = vmatprep.subr.mxu0 0.0
    %1019 = vmatpush1.msra.mxu0 0.0
    %1020 = vmatprep.subr.mxu0 0.0
    %1021 = vmatpush1.msra.mxu0 0.0
    %1022 = vmatprep.subr.mxu0 0.0
    %1023 = vmatpush1.msra.mxu0 0.0
    %1024 = vmatprep.subr.mxu0 0.0
    %1025 = vmatpush1.msra.mxu0 0.0
    %1026 = vmatprep.subr.mxu0 0.0
    %1027 = vmatpush1.msra.mxu0 0.0
    %1028 = vmatprep.subr.mxu0 0.0
    %1029 = vmatpush1.msra.mxu0 0.0
    %1030 = vmatprep.subr.mxu0 0.0
    %1031 = vmatpush1.msra.mxu0 0.0
    %1032 = vmatprep.subr.mxu0 0.0
    %1033 = vmatpush1.msra.mxu0 0.0
    %1034 = vmatprep.subr.mxu0 0.0
    %1035 = vmatpush1.msra.mxu0 0.0
    %1036 = vmatprep.subr.mxu0 0.0
    %1037 = vmatpush1.msra.mxu0 0.0
    %1038 = vmatprep.subr.mxu0 0.0
    %1039 = vmatpush1.msra.mxu0 0.0
    %1040 = vmatprep.subr.mxu0 0.0
    %1041 = vmatpush1.msra.mxu0 0.0
    %1042 = vmatprep.subr.mxu0 0.0
    %1043 = vmatpush1.msra.mxu0 0.0
    %1044 = vmatprep.subr.mxu0 0.0
    %1045 = vmatpush1.msra.mxu0 0.0
    %1046 = vmatprep.subr.mxu0 0.0
    %1047 = vmatpush1.msra.mxu0 0.0
    %1048 = vmatprep.subr.mxu0 0.0
    %1049 = vmatpush1.msra.mxu0 0.0
    %1050 = vmatprep.subr.mxu0 0.0
    %1051 = vmatpush1.msra.mxu0 0.0
    %1052 = vmatprep.subr.mxu0 0.0
    %1053 = vmatpush1.msra.mxu0 0.0
    %1054 = vmatprep.subr.mxu0 0.0
    %1055 = vmatpush1.msra.mxu0 0.0
    %1056 = vmatprep.mubr.f32.mxu0 0.0
    %1057 = vmatmul.mubr.f32.gmra.mrb[0].mxu0 %v990
    %v1058 = vpop.f32.mrb[0].mxu0
    %v1059 = vadd.f32 0.0, %v1058
    %v1060 = vpop.f32.mrb[0].mxu0
    %1061 = vdwg.mxu0
    %v1062 = vadd.f32 %v892, %v1059
    %v1063 = vxor.u32 %v1062, 2147483648
    %v1064 = vmul.f32 %v1063, 1.442695
    %v1065 = vpow.pop %v1064
    %v1066 = vadd.f32 %v1065, 1.0
    %v1067 = vrcp.pop %v1066
    %v1068 = vmul.f32 1.0, %v1067
    %v1069 = vtanh.pop %v1062
    %v1070 = vmul.f32 %v1068, %v866
    %1072 = vrot.lane.b32.xlu0 %v1069, 64
    %v1073 = vpop.permute.xlu0 %1072
    %v1075 = vmul.f32 %v1068, %v1073
    %1077 = vrot.lane.b32.xlu0 %v1075, 32
    %v1078 = vpop.permute.xlu0 %1077
    %v1080 = vadd.f32 %v1070, %v1078
    %v1081 = vtanh.pop %v1080
    %1083 = vrot.lane.b32.xlu0 %v1081, 64
    %v1084 = vpop.permute.xlu0 %1083
    %v1086 = vmul.f32 %v1068, %v1084
    %1088 = vrot.lane.b32.xlu0 %v989, 32
    %v1089 = vpop.permute.xlu0 %1088
    %s1091 = scalar_lea.vmem [#allocation3], 24
    %1092 = vst.msk [vmem:[%s1091] sm:$0xff] %vm252, %v1089
    %1094 = vrot.lane.b32.xlu0 %v1086, 32
    %v1095 = vpop.permute.xlu0 %1094
    %s1097 = scalar_lea.vmem [#allocation4], 32
    %1098 = vst.msk [vmem:[%s1097] sm:$0xff] %vm252, %v1095
    %v1099 = vld [vmem:[%s891] sm:$0xff]
    %v1100 = vld [vmem:[%s887 + $0x8] sm:$0xff]
    %v1101 = vsel %vm252, %v1089, 0
    %1103 = vmatprep.subr.mxu0 0.0
    %1104 = vmatpush1.msra.mxu0 %v236
    %1105 = vmatprep.subr.mxu0 0.0
    %1106 = vmatpush1.msra.mxu0 %v237
    %1107 = vmatprep.subr.mxu0 0.0
    %1108 = vmatpush1.msra.mxu0 %v238
    %1109 = vmatprep.subr.mxu0 0.0
    %1110 = vmatpush1.msra.mxu0 %v239
    %1111 = vmatprep.subr.mxu0 0.0
    %1112 = vmatpush1.msra.mxu0 0.0
    %1113 = vmatprep.subr.mxu0 0.0
    %1114 = vmatpush1.msra.mxu0 0.0
    %1115 = vmatprep.subr.mxu0 0.0
    %1116 = vmatpush1.msra.mxu0 0.0
    %1117 = vmatprep.subr.mxu0 0.0
    %1118 = vmatpush1.msra.mxu0 0.0
    %1119 = vmatprep.subr.mxu0 0.0
    %1120 = vmatpush1.msra.mxu0 0.0
    %1121 = vmatprep.subr.mxu0 0.0
    %1122 = vmatpush1.msra.mxu0 0.0
    %1123 = vmatprep.subr.mxu0 0.0
    %1124 = vmatpush1.msra.mxu0 0.0
    %1125 = vmatprep.subr.mxu0 0.0
    %1126 = vmatpush1.msra.mxu0 0.0
    %1127 = vmatprep.subr.mxu0 0.0
    %1128 = vmatpush1.msra.mxu0 0.0
    %1129 = vmatprep.subr.mxu0 0.0
    %1130 = vmatpush1.msra.mxu0 0.0
    %1131 = vmatprep.subr.mxu0 0.0
    %1132 = vmatpush1.msra.mxu0 0.0
    %1133 = vmatprep.subr.mxu0 0.0
    %1134 = vmatpush1.msra.mxu0 0.0
    %1135 = vmatprep.subr.mxu0 0.0
    %1136 = vmatpush1.msra.mxu0 0.0
    %1137 = vmatprep.subr.mxu0 0.0
    %1138 = vmatpush1.msra.mxu0 0.0
    %1139 = vmatprep.subr.mxu0 0.0
    %1140 = vmatpush1.msra.mxu0 0.0
    %1141 = vmatprep.subr.mxu0 0.0
    %1142 = vmatpush1.msra.mxu0 0.0
    %1143 = vmatprep.subr.mxu0 0.0
    %1144 = vmatpush1.msra.mxu0 0.0
    %1145 = vmatprep.subr.mxu0 0.0
    %1146 = vmatpush1.msra.mxu0 0.0
    %1147 = vmatprep.subr.mxu0 0.0
    %1148 = vmatpush1.msra.mxu0 0.0
    %1149 = vmatprep.subr.mxu0 0.0
    %1150 = vmatpush1.msra.mxu0 0.0
    %1151 = vmatprep.subr.mxu0 0.0
    %1152 = vmatpush1.msra.mxu0 0.0
    %1153 = vmatprep.subr.mxu0 0.0
    %1154 = vmatpush1.msra.mxu0 0.0
    %1155 = vmatprep.subr.mxu0 0.0
    %1156 = vmatpush1.msra.mxu0 0.0
    %1157 = vmatprep.subr.mxu0 0.0
    %1158 = vmatpush1.msra.mxu0 0.0
    %1159 = vmatprep.subr.mxu0 0.0
    %1160 = vmatpush1.msra.mxu0 0.0
    %1161 = vmatprep.subr.mxu0 0.0
    %1162 = vmatpush1.msra.mxu0 0.0
    %1163 = vmatprep.subr.mxu0 0.0
    %1164 = vmatpush1.msra.mxu0 0.0
    %1165 = vmatprep.subr.mxu0 0.0
    %1166 = vmatpush1.msra.mxu0 0.0
    %1167 = vmatprep.mubr.f32.mxu0 0.0
    %1168 = vmatmul.mubr.f32.gmra.mrb[0].mxu0 %v1101
    %v1169 = vpop.f32.mrb[0].mxu0
    %v1170 = vadd.f32 0.0, %v1169
    %v1171 = vpop.f32.mrb[0].mxu0
    %1172 = vdwg.mxu0
    %v1173 = vadd.f32 %v1099, %v1170
    %v1174 = vxor.u32 %v1173, 2147483648
    %v1175 = vmul.f32 %v1174, 1.442695
    %v1176 = vpow.pop %v1175
    %v1177 = vadd.f32 %v1176, 1.0
    %v1178 = vrcp.pop %v1177
    %v1179 = vmul.f32 1.0, %v1178
    %v1180 = vtanh.pop %v1173
    %v1181 = vmul.f32 %v1179, %v983
    %1183 = vrot.lane.b32.xlu0 %v1180, 64
    %v1184 = vpop.permute.xlu0 %1183
    %v1186 = vmul.f32 %v1179, %v1184
    %1188 = vrot.lane.b32.xlu0 %v1186, 32
    %v1189 = vpop.permute.xlu0 %1188
    %v1191 = vadd.f32 %v1181, %v1189
    %v1192 = vtanh.pop %v1191
    %1194 = vrot.lane.b32.xlu0 %v1192, 64
    %v1195 = vpop.permute.xlu0 %1194
    %v1197 = vmul.f32 %v1179, %v1195
    %v1198 = vsel %vm252, %v1095, 0
    %1200 = vmatprep.subr.mxu0 0.0
    %1201 = vmatpush1.msra.mxu0 %v240
    %1202 = vmatprep.subr.mxu0 0.0
    %1203 = vmatpush1.msra.mxu0 %v241
    %1204 = vmatprep.subr.mxu0 0.0
    %1205 = vmatpush1.msra.mxu0 %v242
    %1206 = vmatprep.subr.mxu0 0.0
    %1207 = vmatpush1.msra.mxu0 %v243
    %1208 = vmatprep.subr.mxu0 0.0
    %1209 = vmatpush1.msra.mxu0 0.0
    %1210 = vmatprep.subr.mxu0 0.0
    %1211 = vmatpush1.msra.mxu0 0.0
    %1212 = vmatprep.subr.mxu0 0.0
    %1213 = vmatpush1.msra.mxu0 0.0
    %1214 = vmatprep.subr.mxu0 0.0
    %1215 = vmatpush1.msra.mxu0 0.0
    %1216 = vmatprep.subr.mxu0 0.0
    %1217 = vmatpush1.msra.mxu0 0.0
    %1218 = vmatprep.subr.mxu0 0.0
    %1219 = vmatpush1.msra.mxu0 0.0
    %1220 = vmatprep.subr.mxu0 0.0
    %1221 = vmatpush1.msra.mxu0 0.0
    %1222 = vmatprep.subr.mxu0 0.0
    %1223 = vmatpush1.msra.mxu0 0.0
    %1224 = vmatprep.subr.mxu0 0.0
    %1225 = vmatpush1.msra.mxu0 0.0
    %1226 = vmatprep.subr.mxu0 0.0
    %1227 = vmatpush1.msra.mxu0 0.0
    %1228 = vmatprep.subr.mxu0 0.0
    %1229 = vmatpush1.msra.mxu0 0.0
    %1230 = vmatprep.subr.mxu0 0.0
    %1231 = vmatpush1.msra.mxu0 0.0
    %1232 = vmatprep.subr.mxu0 0.0
    %1233 = vmatpush1.msra.mxu0 0.0
    %1234 = vmatprep.subr.mxu0 0.0
    %1235 = vmatpush1.msra.mxu0 0.0
    %1236 = vmatprep.subr.mxu0 0.0
    %1237 = vmatpush1.msra.mxu0 0.0
    %1238 = vmatprep.subr.mxu0 0.0
    %1239 = vmatpush1.msra.mxu0 0.0
    %1240 = vmatprep.subr.mxu0 0.0
    %1241 = vmatpush1.msra.mxu0 0.0
    %1242 = vmatprep.subr.mxu0 0.0
    %1243 = vmatpush1.msra.mxu0 0.0
    %1244 = vmatprep.subr.mxu0 0.0
    %1245 = vmatpush1.msra.mxu0 0.0
    %1246 = vmatprep.subr.mxu0 0.0
    %1247 = vmatpush1.msra.mxu0 0.0
    %1248 = vmatprep.subr.mxu0 0.0
    %1249 = vmatpush1.msra.mxu0 0.0
    %1250 = vmatprep.subr.mxu0 0.0
    %1251 = vmatpush1.msra.mxu0 0.0
    %1252 = vmatprep.subr.mxu0 0.0
    %1253 = vmatpush1.msra.mxu0 0.0
    %1254 = vmatprep.subr.mxu0 0.0
    %1255 = vmatpush1.msra.mxu0 0.0
    %1256 = vmatprep.subr.mxu0 0.0
    %1257 = vmatpush1.msra.mxu0 0.0
    %1258 = vmatprep.subr.mxu0 0.0
    %1259 = vmatpush1.msra.mxu0 0.0
    %1260 = vmatprep.subr.mxu0 0.0
    %1261 = vmatpush1.msra.mxu0 0.0
    %1262 = vmatprep.subr.mxu0 0.0
    %1263 = vmatpush1.msra.mxu0 0.0
    %1264 = vmatprep.mubr.f32.mxu0 0.0
    %1265 = vmatmul.mubr.f32.gmra.mrb[0].mxu0 %v1198
    %v1266 = vpop.f32.mrb[0].mxu0
    %v1267 = vadd.f32 0.0, %v1266
    %v1268 = vpop.f32.mrb[0].mxu0
    %1269 = vdwg.mxu0
    %v1270 = vadd.f32 %v1100, %v1267
    %v1271 = vxor.u32 %v1270, 2147483648
    %v1272 = vmul.f32 %v1271, 1.442695
    %v1273 = vpow.pop %v1272
    %v1274 = vadd.f32 %v1273, 1.0
    %v1275 = vrcp.pop %v1274
    %v1276 = vmul.f32 1.0, %v1275
    %v1277 = vtanh.pop %v1270
    %v1278 = vmul.f32 %v1276, %v1080
    %1280 = vrot.lane.b32.xlu0 %v1277, 64
    %v1281 = vpop.permute.xlu0 %1280
    %v1283 = vmul.f32 %v1276, %v1281
    %1285 = vrot.lane.b32.xlu0 %v1283, 32
    %v1286 = vpop.permute.xlu0 %1285
    %v1288 = vadd.f32 %v1278, %v1286
    %v1289 = vtanh.pop %v1288
    %1291 = vrot.lane.b32.xlu0 %v1289, 64
    %v1292 = vpop.permute.xlu0 %1291
    %v1294 = vmul.f32 %v1276, %v1292
    %1296 = vrot.lane.b32.xlu0 %v1197, 32
    %v1297 = vpop.permute.xlu0 %1296
    %s1299 = scalar_lea.vmem [#allocation3], 32
    %1300 = vst.msk [vmem:[%s1299] sm:$0xff] %vm252, %v1297
    %1302 = vrot.lane.b32.xlu0 %v1294, 32
    %v1303 = vpop.permute.xlu0 %1302
    %s1305 = scalar_lea.vmem [#allocation4], 24
    %1306 = vst.msk [vmem:[%s1305] sm:$0xff] %vm252, %v1303
    %v1307 = vld [vmem:[%s677] sm:$0xff]
    %v1308 = vld [vmem:[%s673 + $0x8] sm:$0xff]
    %v1309 = vsel %vm252, %v1297, 0
    %1311 = vmatprep.subr.mxu0 0.0
    %1312 = vmatpush1.msra.mxu0 %v236
    %1313 = vmatprep.subr.mxu0 0.0
    %1314 = vmatpush1.msra.mxu0 %v237
    %1315 = vmatprep.subr.mxu0 0.0
    %1316 = vmatpush1.msra.mxu0 %v238
    %1317 = vmatprep.subr.mxu0 0.0
    %1318 = vmatpush1.msra.mxu0 %v239
    %1319 = vmatprep.subr.mxu0 0.0
    %1320 = vmatpush1.msra.mxu0 0.0
    %1321 = vmatprep.subr.mxu0 0.0
    %1322 = vmatpush1.msra.mxu0 0.0
    %1323 = vmatprep.subr.mxu0 0.0
    %1324 = vmatpush1.msra.mxu0 0.0
    %1325 = vmatprep.subr.mxu0 0.0
    %1326 = vmatpush1.msra.mxu0 0.0
    %1327 = vmatprep.subr.mxu0 0.0
    %1328 = vmatpush1.msra.mxu0 0.0
    %1329 = vmatprep.subr.mxu0 0.0
    %1330 = vmatpush1.msra.mxu0 0.0
    %1331 = vmatprep.subr.mxu0 0.0
    %1332 = vmatpush1.msra.mxu0 0.0
    %1333 = vmatprep.subr.mxu0 0.0
    %1334 = vmatpush1.msra.mxu0 0.0
    %1335 = vmatprep.subr.mxu0 0.0
    %1336 = vmatpush1.msra.mxu0 0.0
    %1337 = vmatprep.subr.mxu0 0.0
    %1338 = vmatpush1.msra.mxu0 0.0
    %1339 = vmatprep.subr.mxu0 0.0
    %1340 = vmatpush1.msra.mxu0 0.0
    %1341 = vmatprep.subr.mxu0 0.0
    %1342 = vmatpush1.msra.mxu0 0.0
    %1343 = vmatprep.subr.mxu0 0.0
    %1344 = vmatpush1.msra.mxu0 0.0
    %1345 = vmatprep.subr.mxu0 0.0
    %1346 = vmatpush1.msra.mxu0 0.0
    %1347 = vmatprep.subr.mxu0 0.0
    %1348 = vmatpush1.msra.mxu0 0.0
    %1349 = vmatprep.subr.mxu0 0.0
    %1350 = vmatpush1.msra.mxu0 0.0
    %1351 = vmatprep.subr.mxu0 0.0
    %1352 = vmatpush1.msra.mxu0 0.0
    %1353 = vmatprep.subr.mxu0 0.0
    %1354 = vmatpush1.msra.mxu0 0.0
    %1355 = vmatprep.subr.mxu0 0.0
    %1356 = vmatpush1.msra.mxu0 0.0
    %1357 = vmatprep.subr.mxu0 0.0
    %1358 = vmatpush1.msra.mxu0 0.0
    %1359 = vmatprep.subr.mxu0 0.0
    %1360 = vmatpush1.msra.mxu0 0.0
    %1361 = vmatprep.subr.mxu0 0.0
    %1362 = vmatpush1.msra.mxu0 0.0
    %1363 = vmatprep.subr.mxu0 0.0
    %1364 = vmatpush1.msra.mxu0 0.0
    %1365 = vmatprep.subr.mxu0 0.0
    %1366 = vmatpush1.msra.mxu0 0.0
    %1367 = vmatprep.subr.mxu0 0.0
    %1368 = vmatpush1.msra.mxu0 0.0
    %1369 = vmatprep.subr.mxu0 0.0
    %1370 = vmatpush1.msra.mxu0 0.0
    %1371 = vmatprep.subr.mxu0 0.0
    %1372 = vmatpush1.msra.mxu0 0.0
    %1373 = vmatprep.subr.mxu0 0.0
    %1374 = vmatpush1.msra.mxu0 0.0
    %1375 = vmatprep.mubr.f32.mxu0 0.0
    %1376 = vmatmul.mubr.f32.gmra.mrb[0].mxu0 %v1309
    %v1377 = vpop.f32.mrb[0].mxu0
    %v1378 = vadd.f32 0.0, %v1377
    %v1379 = vpop.f32.mrb[0].mxu0
    %1380 = vdwg.mxu0
    %v1381 = vadd.f32 %v1307, %v1378
    %v1382 = vxor.u32 %v1381, 2147483648
    %v1383 = vmul.f32 %v1382, 1.442695
    %v1384 = vpow.pop %v1383
    %v1385 = vadd.f32 %v1384, 1.0
    %v1386 = vrcp.pop %v1385
    %v1387 = vmul.f32 1.0, %v1386
    %v1388 = vtanh.pop %v1381
    %v1389 = vmul.f32 %v1387, %v1191
    %1391 = vrot.lane.b32.xlu0 %v1388, 64
    %v1392 = vpop.permute.xlu0 %1391
    %v1394 = vmul.f32 %v1387, %v1392
    %1396 = vrot.lane.b32.xlu0 %v1394, 32
    %v1397 = vpop.permute.xlu0 %1396
    %v1399 = vadd.f32 %v1389, %v1397
    %v1400 = vtanh.pop %v1399
    %1402 = vrot.lane.b32.xlu0 %v1400, 64
    %v1403 = vpop.permute.xlu0 %1402
    %v1405 = vmul.f32 %v1387, %v1403
    %v1406 = vsel %vm252, %v1303, 0
    %1408 = vmatprep.subr.mxu0 0.0
    %1409 = vmatpush1.msra.mxu0 %v240
    %1410 = vmatprep.subr.mxu0 0.0
    %1411 = vmatpush1.msra.mxu0 %v241
    %1412 = vmatprep.subr.mxu0 0.0
    %1413 = vmatpush1.msra.mxu0 %v242
    %1414 = vmatprep.subr.mxu0 0.0
    %1415 = vmatpush1.msra.mxu0 %v243
    %1416 = vmatprep.subr.mxu0 0.0
    %1417 = vmatpush1.msra.mxu0 0.0
    %1418 = vmatprep.subr.mxu0 0.0
    %1419 = vmatpush1.msra.mxu0 0.0
    %1420 = vmatprep.subr.mxu0 0.0
    %1421 = vmatpush1.msra.mxu0 0.0
    %1422 = vmatprep.subr.mxu0 0.0
    %1423 = vmatpush1.msra.mxu0 0.0
    %1424 = vmatprep.subr.mxu0 0.0
    %1425 = vmatpush1.msra.mxu0 0.0
    %1426 = vmatprep.subr.mxu0 0.0
    %1427 = vmatpush1.msra.mxu0 0.0
    %1428 = vmatprep.subr.mxu0 0.0
    %1429 = vmatpush1.msra.mxu0 0.0
    %1430 = vmatprep.subr.mxu0 0.0
    %1431 = vmatpush1.msra.mxu0 0.0
    %1432 = vmatprep.subr.mxu0 0.0
    %1433 = vmatpush1.msra.mxu0 0.0
    %1434 = vmatprep.subr.mxu0 0.0
    %1435 = vmatpush1.msra.mxu0 0.0
    %1436 = vmatprep.subr.mxu0 0.0
    %1437 = vmatpush1.msra.mxu0 0.0
    %1438 = vmatprep.subr.mxu0 0.0
    %1439 = vmatpush1.msra.mxu0 0.0
    %1440 = vmatprep.subr.mxu0 0.0
    %1441 = vmatpush1.msra.mxu0 0.0
    %1442 = vmatprep.subr.mxu0 0.0
    %1443 = vmatpush1.msra.mxu0 0.0
    %1444 = vmatprep.subr.mxu0 0.0
    %1445 = vmatpush1.msra.mxu0 0.0
    %1446 = vmatprep.subr.mxu0 0.0
    %1447 = vmatpush1.msra.mxu0 0.0
    %1448 = vmatprep.subr.mxu0 0.0
    %1449 = vmatpush1.msra.mxu0 0.0
    %1450 = vmatprep.subr.mxu0 0.0
    %1451 = vmatpush1.msra.mxu0 0.0
    %1452 = vmatprep.subr.mxu0 0.0
    %1453 = vmatpush1.msra.mxu0 0.0
    %1454 = vmatprep.subr.mxu0 0.0
    %1455 = vmatpush1.msra.mxu0 0.0
    %1456 = vmatprep.subr.mxu0 0.0
    %1457 = vmatpush1.msra.mxu0 0.0
    %1458 = vmatprep.subr.mxu0 0.0
    %1459 = vmatpush1.msra.mxu0 0.0
    %1460 = vmatprep.subr.mxu0 0.0
    %1461 = vmatpush1.msra.mxu0 0.0
    %1462 = vmatprep.subr.mxu0 0.0
    %1463 = vmatpush1.msra.mxu0 0.0
    %1464 = vmatprep.subr.mxu0 0.0
    %1465 = vmatpush1.msra.mxu0 0.0
    %1466 = vmatprep.subr.mxu0 0.0
    %1467 = vmatpush1.msra.mxu0 0.0
    %1468 = vmatprep.subr.mxu0 0.0
    %1469 = vmatpush1.msra.mxu0 0.0
    %1470 = vmatprep.subr.mxu0 0.0
    %1471 = vmatpush1.msra.mxu0 0.0
    %1472 = vmatprep.mubr.f32.mxu0 0.0
    %1473 = vmatmul.mubr.f32.gmra.mrb[0].mxu0 %v1406
    %v1474 = vpop.f32.mrb[0].mxu0
    %v1475 = vadd.f32 0.0, %v1474
    %v1476 = vpop.f32.mrb[0].mxu0
    %1477 = vdwg.mxu0
    %v1478 = vadd.f32 %v1308, %v1475
    %v1479 = vxor.u32 %v1478, 2147483648
    %v1480 = vmul.f32 %v1479, 1.442695
    %v1481 = vpow.pop %v1480
    %v1482 = vadd.f32 %v1481, 1.0
    %v1483 = vrcp.pop %v1482
    %v1484 = vmul.f32 1.0, %v1483
    %v1485 = vtanh.pop %v1478
    %v1486 = vmul.f32 %v1484, %v1288
    %1488 = vrot.lane.b32.xlu0 %v1485, 64
    %v1489 = vpop.permute.xlu0 %1488
    %v1491 = vmul.f32 %v1484, %v1489
    %1493 = vrot.lane.b32.xlu0 %v1491, 32
    %v1494 = vpop.permute.xlu0 %1493
    %v1496 = vadd.f32 %v1486, %v1494
    %v1497 = vtanh.pop %v1496
    %1499 = vrot.lane.b32.xlu0 %v1497, 64
    %v1500 = vpop.permute.xlu0 %1499
    %v1502 = vmul.f32 %v1484, %v1500
    %1504 = vrot.lane.b32.xlu0 %v1405, 32
    %v1505 = vpop.permute.xlu0 %1504
    %s1507 = scalar_lea.vmem [#allocation3], 40
    %1508 = vst.msk [vmem:[%s1507] sm:$0xff] %vm252, %v1505
    %1510 = vrot.lane.b32.xlu0 %v1502, 32
    %v1511 = vpop.permute.xlu0 %1510
    %s1513 = scalar_lea.vmem [#allocation4], 16
    %1514 = vst.msk [vmem:[%s1513] sm:$0xff] %vm252, %v1511
    %v1515 = vld [vmem:[%s463] sm:$0xff]
    %v1516 = vld [vmem:[%s459 + $0x8] sm:$0xff]
    %v1517 = vsel %vm252, %v1505, 0
    %1519 = vmatprep.subr.mxu0 0.0
    %1520 = vmatpush1.msra.mxu0 %v236
    %1521 = vmatprep.subr.mxu0 0.0
    %1522 = vmatpush1.msra.mxu0 %v237
    %1523 = vmatprep.subr.mxu0 0.0
    %1524 = vmatpush1.msra.mxu0 %v238
    %1525 = vmatprep.subr.mxu0 0.0
    %1526 = vmatpush1.msra.mxu0 %v239
    %1527 = vmatprep.subr.mxu0 0.0
    %1528 = vmatpush1.msra.mxu0 0.0
    %1529 = vmatprep.subr.mxu0 0.0
    %1530 = vmatpush1.msra.mxu0 0.0
    %1531 = vmatprep.subr.mxu0 0.0
    %1532 = vmatpush1.msra.mxu0 0.0
    %1533 = vmatprep.subr.mxu0 0.0
    %1534 = vmatpush1.msra.mxu0 0.0
    %1535 = vmatprep.subr.mxu0 0.0
    %1536 = vmatpush1.msra.mxu0 0.0
    %1537 = vmatprep.subr.mxu0 0.0
    %1538 = vmatpush1.msra.mxu0 0.0
    %1539 = vmatprep.subr.mxu0 0.0
    %1540 = vmatpush1.msra.mxu0 0.0
    %1541 = vmatprep.subr.mxu0 0.0
    %1542 = vmatpush1.msra.mxu0 0.0
    %1543 = vmatprep.subr.mxu0 0.0
    %1544 = vmatpush1.msra.mxu0 0.0
    %1545 = vmatprep.subr.mxu0 0.0
    %1546 = vmatpush1.msra.mxu0 0.0
    %1547 = vmatprep.subr.mxu0 0.0
    %1548 = vmatpush1.msra.mxu0 0.0
    %1549 = vmatprep.subr.mxu0 0.0
    %1550 = vmatpush1.msra.mxu0 0.0
    %1551 = vmatprep.subr.mxu0 0.0
    %1552 = vmatpush1.msra.mxu0 0.0
    %1553 = vmatprep.subr.mxu0 0.0
    %1554 = vmatpush1.msra.mxu0 0.0
    %1555 = vmatprep.subr.mxu0 0.0
    %1556 = vmatpush1.msra.mxu0 0.0
    %1557 = vmatprep.subr.mxu0 0.0
    %1558 = vmatpush1.msra.mxu0 0.0
    %1559 = vmatprep.subr.mxu0 0.0
    %1560 = vmatpush1.msra.mxu0 0.0
    %1561 = vmatprep.subr.mxu0 0.0
    %1562 = vmatpush1.msra.mxu0 0.0
    %1563 = vmatprep.subr.mxu0 0.0
    %1564 = vmatpush1.msra.mxu0 0.0
    %1565 = vmatprep.subr.mxu0 0.0
    %1566 = vmatpush1.msra.mxu0 0.0
    %1567 = vmatprep.subr.mxu0 0.0
    %1568 = vmatpush1.msra.mxu0 0.0
    %1569 = vmatprep.subr.mxu0 0.0
    %1570 = vmatpush1.msra.mxu0 0.0
    %1571 = vmatprep.subr.mxu0 0.0
    %1572 = vmatpush1.msra.mxu0 0.0
    %1573 = vmatprep.subr.mxu0 0.0
    %1574 = vmatpush1.msra.mxu0 0.0
    %1575 = vmatprep.subr.mxu0 0.0
    %1576 = vmatpush1.msra.mxu0 0.0
    %1577 = vmatprep.subr.mxu0 0.0
    %1578 = vmatpush1.msra.mxu0 0.0
    %1579 = vmatprep.subr.mxu0 0.0
    %1580 = vmatpush1.msra.mxu0 0.0
    %1581 = vmatprep.subr.mxu0 0.0
    %1582 = vmatpush1.msra.mxu0 0.0
    %1583 = vmatprep.mubr.f32.mxu0 0.0
    %1584 = vmatmul.mubr.f32.gmra.mrb[0].mxu0 %v1517
    %v1585 = vpop.f32.mrb[0].mxu0
    %v1586 = vadd.f32 0.0, %v1585
    %v1587 = vpop.f32.mrb[0].mxu0
    %1588 = vdwg.mxu0
    %v1589 = vadd.f32 %v1515, %v1586
    %v1590 = vxor.u32 %v1589, 2147483648
    %v1591 = vmul.f32 %v1590, 1.442695
    %v1592 = vpow.pop %v1591
    %v1593 = vadd.f32 %v1592, 1.0
    %v1594 = vrcp.pop %v1593
    %v1595 = vmul.f32 1.0, %v1594
    %v1596 = vtanh.pop %v1589
    %v1597 = vmul.f32 %v1595, %v1399
    %1599 = vrot.lane.b32.xlu0 %v1596, 64
    %v1600 = vpop.permute.xlu0 %1599
    %v1602 = vmul.f32 %v1595, %v1600
    %1604 = vrot.lane.b32.xlu0 %v1602, 32
    %v1605 = vpop.permute.xlu0 %1604
    %v1607 = vadd.f32 %v1597, %v1605
    %v1608 = vtanh.pop %v1607
    %1610 = vrot.lane.b32.xlu0 %v1608, 64
    %v1611 = vpop.permute.xlu0 %1610
    %v1613 = vmul.f32 %v1595, %v1611
    %v1614 = vsel %vm252, %v1511, 0
    %1616 = vmatprep.subr.mxu0 0.0
    %1617 = vmatpush1.msra.mxu0 %v240
    %1618 = vmatprep.subr.mxu0 0.0
    %1619 = vmatpush1.msra.mxu0 %v241
    %1620 = vmatprep.subr.mxu0 0.0
    %1621 = vmatpush1.msra.mxu0 %v242
    %1622 = vmatprep.subr.mxu0 0.0
    %1623 = vmatpush1.msra.mxu0 %v243
    %1624 = vmatprep.subr.mxu0 0.0
    %1625 = vmatpush1.msra.mxu0 0.0
    %1626 = vmatprep.subr.mxu0 0.0
    %1627 = vmatpush1.msra.mxu0 0.0
    %1628 = vmatprep.subr.mxu0 0.0
    %1629 = vmatpush1.msra.mxu0 0.0
    %1630 = vmatprep.subr.mxu0 0.0
    %1631 = vmatpush1.msra.mxu0 0.0
    %1632 = vmatprep.subr.mxu0 0.0
    %1633 = vmatpush1.msra.mxu0 0.0
    %1634 = vmatprep.subr.mxu0 0.0
    %1635 = vmatpush1.msra.mxu0 0.0
    %1636 = vmatprep.subr.mxu0 0.0
    %1637 = vmatpush1.msra.mxu0 0.0
    %1638 = vmatprep.subr.mxu0 0.0
    %1639 = vmatpush1.msra.mxu0 0.0
    %1640 = vmatprep.subr.mxu0 0.0
    %1641 = vmatpush1.msra.mxu0 0.0
    %1642 = vmatprep.subr.mxu0 0.0
    %1643 = vmatpush1.msra.mxu0 0.0
    %1644 = vmatprep.subr.mxu0 0.0
    %1645 = vmatpush1.msra.mxu0 0.0
    %1646 = vmatprep.subr.mxu0 0.0
    %1647 = vmatpush1.msra.mxu0 0.0
    %1648 = vmatprep.subr.mxu0 0.0
    %1649 = vmatpush1.msra.mxu0 0.0
    %1650 = vmatprep.subr.mxu0 0.0
    %1651 = vmatpush1.msra.mxu0 0.0
    %1652 = vmatprep.subr.mxu0 0.0
    %1653 = vmatpush1.msra.mxu0 0.0
    %1654 = vmatprep.subr.mxu0 0.0
    %1655 = vmatpush1.msra.mxu0 0.0
    %1656 = vmatprep.subr.mxu0 0.0
    %1657 = vmatpush1.msra.mxu0 0.0
    %1658 = vmatprep.subr.mxu0 0.0
    %1659 = vmatpush1.msra.mxu0 0.0
    %1660 = vmatprep.subr.mxu0 0.0
    %1661 = vmatpush1.msra.mxu0 0.0
    %1662 = vmatprep.subr.mxu0 0.0
    %1663 = vmatpush1.msra.mxu0 0.0
    %1664 = vmatprep.subr.mxu0 0.0
    %1665 = vmatpush1.msra.mxu0 0.0
    %1666 = vmatprep.subr.mxu0 0.0
    %1667 = vmatpush1.msra.mxu0 0.0
    %1668 = vmatprep.subr.mxu0 0.0
    %1669 = vmatpush1.msra.mxu0 0.0
    %1670 = vmatprep.subr.mxu0 0.0
    %1671 = vmatpush1.msra.mxu0 0.0
    %1672 = vmatprep.subr.mxu0 0.0
    %1673 = vmatpush1.msra.mxu0 0.0
    %1674 = vmatprep.subr.mxu0 0.0
    %1675 = vmatpush1.msra.mxu0 0.0
    %1676 = vmatprep.subr.mxu0 0.0
    %1677 = vmatpush1.msra.mxu0 0.0
    %1678 = vmatprep.subr.mxu0 0.0
    %1679 = vmatpush1.msra.mxu0 0.0
    %1680 = vmatprep.mubr.f32.mxu0 0.0
    %1681 = vmatmul.mubr.f32.gmra.mrb[0].mxu0 %v1614
    %v1682 = vpop.f32.mrb[0].mxu0
    %v1683 = vadd.f32 0.0, %v1682
    %v1684 = vpop.f32.mrb[0].mxu0
    %1685 = vdwg.mxu0
    %v1686 = vadd.f32 %v1516, %v1683
    %v1687 = vxor.u32 %v1686, 2147483648
    %v1688 = vmul.f32 %v1687, 1.442695
    %v1689 = vpow.pop %v1688
    %v1690 = vadd.f32 %v1689, 1.0
    %v1691 = vrcp.pop %v1690
    %v1692 = vmul.f32 1.0, %v1691
    %v1693 = vtanh.pop %v1686
    %v1694 = vmul.f32 %v1692, %v1496
    %1696 = vrot.lane.b32.xlu0 %v1693, 64
    %v1697 = vpop.permute.xlu0 %1696
    %v1699 = vmul.f32 %v1692, %v1697
    %1701 = vrot.lane.b32.xlu0 %v1699, 32
    %v1702 = vpop.permute.xlu0 %1701
    %v1704 = vadd.f32 %v1694, %v1702
    %v1705 = vtanh.pop %v1704
    %1707 = vrot.lane.b32.xlu0 %v1705, 64
    %v1708 = vpop.permute.xlu0 %1707
    %v1710 = vmul.f32 %v1692, %v1708
    %1712 = vrot.lane.b32.xlu0 %v1613, 32
    %v1713 = vpop.permute.xlu0 %1712
    %s1715 = scalar_lea.vmem [#allocation3], 48
    %1716 = vst.msk [vmem:[%s1715] sm:$0xff] %vm252, %v1713
    %1718 = vrot.lane.b32.xlu0 %v1710, 32
    %v1719 = vpop.permute.xlu0 %1718
    %s1721 = scalar_lea.vmem [#allocation4], 8
    %1722 = vst.msk [vmem:[%s1721] sm:$0xff] %vm252, %v1719
    %v1723 = vld [vmem:[%s250] sm:$0xff]
    %v1724 = vld [vmem:[%s246 + $0x8] sm:$0xff]
    %v1725 = vsel %vm252, %v1713, 0
    %1727 = vmatprep.subr.mxu0 0.0
    %1728 = vmatpush1.msra.mxu0 %v236
    %1729 = vmatprep.subr.mxu0 0.0
    %1730 = vmatpush1.msra.mxu0 %v237
    %1731 = vmatprep.subr.mxu0 0.0
    %1732 = vmatpush1.msra.mxu0 %v238
    %1733 = vmatprep.subr.mxu0 0.0
    %1734 = vmatpush1.msra.mxu0 %v239
    %1735 = vmatprep.subr.mxu0 0.0
    %1736 = vmatpush1.msra.mxu0 0.0
    %1737 = vmatprep.subr.mxu0 0.0
    %1738 = vmatpush1.msra.mxu0 0.0
    %1739 = vmatprep.subr.mxu0 0.0
    %1740 = vmatpush1.msra.mxu0 0.0
    %1741 = vmatprep.subr.mxu0 0.0
    %1742 = vmatpush1.msra.mxu0 0.0
    %1743 = vmatprep.subr.mxu0 0.0
    %1744 = vmatpush1.msra.mxu0 0.0
    %1745 = vmatprep.subr.mxu0 0.0
    %1746 = vmatpush1.msra.mxu0 0.0
    %1747 = vmatprep.subr.mxu0 0.0
    %1748 = vmatpush1.msra.mxu0 0.0
    %1749 = vmatprep.subr.mxu0 0.0
    %1750 = vmatpush1.msra.mxu0 0.0
    %1751 = vmatprep.subr.mxu0 0.0
    %1752 = vmatpush1.msra.mxu0 0.0
    %1753 = vmatprep.subr.mxu0 0.0
    %1754 = vmatpush1.msra.mxu0 0.0
    %1755 = vmatprep.subr.mxu0 0.0
    %1756 = vmatpush1.msra.mxu0 0.0
    %1757 = vmatprep.subr.mxu0 0.0
    %1758 = vmatpush1.msra.mxu0 0.0
    %1759 = vmatprep.subr.mxu0 0.0
    %1760 = vmatpush1.msra.mxu0 0.0
    %1761 = vmatprep.subr.mxu0 0.0
    %1762 = vmatpush1.msra.mxu0 0.0
    %1763 = vmatprep.subr.mxu0 0.0
    %1764 = vmatpush1.msra.mxu0 0.0
    %1765 = vmatprep.subr.mxu0 0.0
    %1766 = vmatpush1.msra.mxu0 0.0
    %1767 = vmatprep.subr.mxu0 0.0
    %1768 = vmatpush1.msra.mxu0 0.0
    %1769 = vmatprep.subr.mxu0 0.0
    %1770 = vmatpush1.msra.mxu0 0.0
    %1771 = vmatprep.subr.mxu0 0.0
    %1772 = vmatpush1.msra.mxu0 0.0
    %1773 = vmatprep.subr.mxu0 0.0
    %1774 = vmatpush1.msra.mxu0 0.0
    %1775 = vmatprep.subr.mxu0 0.0
    %1776 = vmatpush1.msra.mxu0 0.0
    %1777 = vmatprep.subr.mxu0 0.0
    %1778 = vmatpush1.msra.mxu0 0.0
    %1779 = vmatprep.subr.mxu0 0.0
    %1780 = vmatpush1.msra.mxu0 0.0
    %1781 = vmatprep.subr.mxu0 0.0
    %1782 = vmatpush1.msra.mxu0 0.0
    %1783 = vmatprep.subr.mxu0 0.0
    %1784 = vmatpush1.msra.mxu0 0.0
    %1785 = vmatprep.subr.mxu0 0.0
    %1786 = vmatpush1.msra.mxu0 0.0
    %1787 = vmatprep.subr.mxu0 0.0
    %1788 = vmatpush1.msra.mxu0 0.0
    %1789 = vmatprep.subr.mxu0 0.0
    %1790 = vmatpush1.msra.mxu0 0.0
    %1791 = vmatprep.mubr.f32.mxu0 0.0
    %1792 = vmatmul.mubr.f32.gmra.mrb[0].mxu0 %v1725
    %v1793 = vpop.f32.mrb[0].mxu0
    %v1794 = vadd.f32 0.0, %v1793
    %v1795 = vpop.f32.mrb[0].mxu0
    %1796 = vdwg.mxu0
    %v1797 = vadd.f32 %v1723, %v1794
    %v1798 = vxor.u32 %v1797, 2147483648
    %v1799 = vmul.f32 %v1798, 1.442695
    %v1800 = vpow.pop %v1799
    %v1801 = vadd.f32 %v1800, 1.0
    %v1802 = vrcp.pop %v1801
    %v1803 = vmul.f32 1.0, %v1802
    %v1804 = vtanh.pop %v1797
    %v1805 = vmul.f32 %v1803, %v1607
    %1807 = vrot.lane.b32.xlu0 %v1804, 64
    %v1808 = vpop.permute.xlu0 %1807
    %v1810 = vmul.f32 %v1803, %v1808
    %1812 = vrot.lane.b32.xlu0 %v1810, 32
    %v1813 = vpop.permute.xlu0 %1812
    %v1815 = vadd.f32 %v1805, %v1813
    %v1816 = vtanh.pop %v1815
    %1818 = vrot.lane.b32.xlu0 %v1816, 64
    %v1819 = vpop.permute.xlu0 %1818
    %v1821 = vmul.f32 %v1803, %v1819
    %v1822 = vsel %vm252, %v1719, 0
    %1824 = vmatprep.subr.mxu0 0.0
    %1825 = vmatpush1.msra.mxu0 %v240
    %1826 = vmatprep.subr.mxu0 0.0
    %1827 = vmatpush1.msra.mxu0 %v241
    %1828 = vmatprep.subr.mxu0 0.0
    %1829 = vmatpush1.msra.mxu0 %v242
    %1830 = vmatprep.subr.mxu0 0.0
    %1831 = vmatpush1.msra.mxu0 %v243
    %1832 = vmatprep.subr.mxu0 0.0
    %1833 = vmatpush1.msra.mxu0 0.0
    %1834 = vmatprep.subr.mxu0 0.0
    %1835 = vmatpush1.msra.mxu0 0.0
    %1836 = vmatprep.subr.mxu0 0.0
    %1837 = vmatpush1.msra.mxu0 0.0
    %1838 = vmatprep.subr.mxu0 0.0
    %1839 = vmatpush1.msra.mxu0 0.0
    %1840 = vmatprep.subr.mxu0 0.0
    %1841 = vmatpush1.msra.mxu0 0.0
    %1842 = vmatprep.subr.mxu0 0.0
    %1843 = vmatpush1.msra.mxu0 0.0
    %1844 = vmatprep.subr.mxu0 0.0
    %1845 = vmatpush1.msra.mxu0 0.0
    %1846 = vmatprep.subr.mxu0 0.0
    %1847 = vmatpush1.msra.mxu0 0.0
    %1848 = vmatprep.subr.mxu0 0.0
    %1849 = vmatpush1.msra.mxu0 0.0
    %1850 = vmatprep.subr.mxu0 0.0
    %1851 = vmatpush1.msra.mxu0 0.0
    %1852 = vmatprep.subr.mxu0 0.0
    %1853 = vmatpush1.msra.mxu0 0.0
    %1854 = vmatprep.subr.mxu0 0.0
    %1855 = vmatpush1.msra.mxu0 0.0
    %1856 = vmatprep.subr.mxu0 0.0
    %1857 = vmatpush1.msra.mxu0 0.0
    %1858 = vmatprep.subr.mxu0 0.0
    %1859 = vmatpush1.msra.mxu0 0.0
    %1860 = vmatprep.subr.mxu0 0.0
    %1861 = vmatpush1.msra.mxu0 0.0
    %1862 = vmatprep.subr.mxu0 0.0
    %1863 = vmatpush1.msra.mxu0 0.0
    %1864 = vmatprep.subr.mxu0 0.0
    %1865 = vmatpush1.msra.mxu0 0.0
    %1866 = vmatprep.subr.mxu0 0.0
    %1867 = vmatpush1.msra.mxu0 0.0
    %1868 = vmatprep.subr.mxu0 0.0
    %1869 = vmatpush1.msra.mxu0 0.0
    %1870 = vmatprep.subr.mxu0 0.0
    %1871 = vmatpush1.msra.mxu0 0.0
    %1872 = vmatprep.subr.mxu0 0.0
    %1873 = vmatpush1.msra.mxu0 0.0
    %1874 = vmatprep.subr.mxu0 0.0
    %1875 = vmatpush1.msra.mxu0 0.0
    %1876 = vmatprep.subr.mxu0 0.0
    %1877 = vmatpush1.msra.mxu0 0.0
    %1878 = vmatprep.subr.mxu0 0.0
    %1879 = vmatpush1.msra.mxu0 0.0
    %1880 = vmatprep.subr.mxu0 0.0
    %1881 = vmatpush1.msra.mxu0 0.0
    %1882 = vmatprep.subr.mxu0 0.0
    %1883 = vmatpush1.msra.mxu0 0.0
    %1884 = vmatprep.subr.mxu0 0.0
    %1885 = vmatpush1.msra.mxu0 0.0
    %1886 = vmatprep.subr.mxu0 0.0
    %1887 = vmatpush1.msra.mxu0 0.0
    %1888 = vmatprep.mubr.f32.mxu0 0.0
    %1889 = vmatmul.mubr.f32.gmra.mrb[0].mxu0 %v1822
    %v1890 = vpop.f32.mrb[0].mxu0
    %v1891 = vadd.f32 0.0, %v1890
    %v1892 = vpop.f32.mrb[0].mxu0
    %1893 = vdwg.mxu0
    %v1894 = vadd.f32 %v1724, %v1891
    %v1895 = vxor.u32 %v1894, 2147483648
    %v1896 = vmul.f32 %v1895, 1.442695
    %v1897 = vpow.pop %v1896
    %v1898 = vadd.f32 %v1897, 1.0
    %v1899 = vrcp.pop %v1898
    %v1900 = vmul.f32 1.0, %v1899
    %v1901 = vtanh.pop %v1894
    %v1902 = vmul.f32 %v1900, %v1704
    %1904 = vrot.lane.b32.xlu0 %v1901, 64
    %v1905 = vpop.permute.xlu0 %1904
    %v1907 = vmul.f32 %v1900, %v1905
    %1909 = vrot.lane.b32.xlu0 %v1907, 32
    %v1910 = vpop.permute.xlu0 %1909
    %v1912 = vadd.f32 %v1902, %v1910
    %v1913 = vtanh.pop %v1912
    %1915 = vrot.lane.b32.xlu0 %v1913, 64
    %v1916 = vpop.permute.xlu0 %1915
    %v1918 = vmul.f32 %v1900, %v1916
    %1920 = vrot.lane.b32.xlu0 %v1821, 32
    %v1921 = vpop.permute.xlu0 %1920
    %s1923 = scalar_lea.vmem [#allocation3], 56
    %1924 = vst.msk [vmem:[%s1923] sm:$0xff] %vm252, %v1921
    %1926 = vrot.lane.b32.xlu0 %v1918, 32
    %v1927 = vpop.permute.xlu0 %1926
    %1929 = vst.msk [vmem:[#allocation4] sm:$0xff] %vm252, %v1927
    %v1930 = vld [vmem:[#allocation3] sm:$0xff]
    %v1931 = vld [vmem:[#allocation3 + $0x8] sm:$0xff]
    %v1932 = vld [vmem:[#allocation3 + $0x10] sm:$0xff]
    %v1933 = vld [vmem:[#allocation3 + $0x18] sm:$0xff]
    %v1934 = vld [vmem:[#allocation3 + $0x20] sm:$0xff]
    %v1935 = vld [vmem:[#allocation3 + $0x28] sm:$0xff]
    %v1936 = vld [vmem:[#allocation3 + $0x30] sm:$0xff]
    %v1937 = vld [vmem:[#allocation3 + $0x38] sm:$0xff]
    %v1938 = vld [vmem:[%s5] sm:$0xff]
    %v1939 = vld [vmem:[%s5 + $0x8] sm:$0xff]
    %v1940 = vld [vmem:[%s5 + $0x10] sm:$0xff]
    %v1941 = vld [vmem:[%s5 + $0x18] sm:$0xff]
    %v1942 = vld [vmem:[#allocation4] sm:$0xff]
    %v1943 = vld [vmem:[#allocation4 + $0x8] sm:$0xff]
    %v1944 = vld [vmem:[#allocation4 + $0x10] sm:$0xff]
    %v1945 = vld [vmem:[#allocation4 + $0x18] sm:$0xff]
    %v1946 = vld [vmem:[#allocation4 + $0x20] sm:$0xff]
    %v1947 = vld [vmem:[#allocation4 + $0x28] sm:$0xff]
    %v1948 = vld [vmem:[#allocation4 + $0x30] sm:$0xff]
    %v1949 = vld [vmem:[#allocation4 + $0x38] sm:$0xff]
    %v1950 = vld [vmem:[#allocation8] sm:$0xff]
    %v1951 = vld [vmem:[#allocation8 + $0x8] sm:$0xff]
    %v1952 = vld [vmem:[#allocation8 + $0x10] sm:$0xff]
    %v1953 = vld [vmem:[#allocation8 + $0x18] sm:$0xff]
    %v1955 = vsel %vm252, %v1942, 0
    %v1958 = vsel %vm252, %v1943, 0
    %v1961 = vsel %vm252, %v1944, 0
    %v1964 = vsel %vm252, %v1945, 0
    %v1967 = vsel %vm252, %v1946, 0
    %v1970 = vsel %vm252, %v1947, 0
    %v1973 = vsel %vm252, %v1948, 0
    %v1976 = vsel %vm252, %v1949, 0
    %1978 = vmatprep.subr.mxu0 0.0
    %1979 = vmatpush1.msra.mxu0 %v1950
    %1980 = vmatprep.subr.mxu0 0.0
    %1981 = vmatpush1.msra.mxu0 %v1951
    %1982 = vmatprep.subr.mxu0 0.0
    %1983 = vmatpush1.msra.mxu0 %v1952
    %1984 = vmatprep.subr.mxu0 0.0
    %1985 = vmatpush1.msra.mxu0 %v1953
    %1986 = vmatprep.subr.mxu0 0.0
    %1987 = vmatpush1.msra.mxu0 0.0
    %1988 = vmatprep.subr.mxu0 0.0
    %1989 = vmatpush1.msra.mxu0 0.0
    %1990 = vmatprep.subr.mxu0 0.0
    %1991 = vmatpush1.msra.mxu0 0.0
    %1992 = vmatprep.subr.mxu0 0.0
    %1993 = vmatpush1.msra.mxu0 0.0
    %1994 = vmatprep.subr.mxu0 0.0
    %1995 = vmatpush1.msra.mxu0 0.0
    %1996 = vmatprep.subr.mxu0 0.0
    %1997 = vmatpush1.msra.mxu0 0.0
    %1998 = vmatprep.subr.mxu0 0.0
    %1999 = vmatpush1.msra.mxu0 0.0
    %2000 = vmatprep.subr.mxu0 0.0
    %2001 = vmatpush1.msra.mxu0 0.0
    %2002 = vmatprep.subr.mxu0 0.0
    %2003 = vmatpush1.msra.mxu0 0.0
    %2004 = vmatprep.subr.mxu0 0.0
    %2005 = vmatpush1.msra.mxu0 0.0
    %2006 = vmatprep.subr.mxu0 0.0
    %2007 = vmatpush1.msra.mxu0 0.0
    %2008 = vmatprep.subr.mxu0 0.0
    %2009 = vmatpush1.msra.mxu0 0.0
    %2010 = vmatprep.subr.mxu0 0.0
    %2011 = vmatpush1.msra.mxu0 0.0
    %2012 = vmatprep.subr.mxu0 0.0
    %2013 = vmatpush1.msra.mxu0 0.0
    %2014 = vmatprep.subr.mxu0 0.0
    %2015 = vmatpush1.msra.mxu0 0.0
    %2016 = vmatprep.subr.mxu0 0.0
    %2017 = vmatpush1.msra.mxu0 0.0
    %2018 = vmatprep.subr.mxu0 0.0
    %2019 = vmatpush1.msra.mxu0 0.0
    %2020 = vmatprep.subr.mxu0 0.0
    %2021 = vmatpush1.msra.mxu0 0.0
    %2022 = vmatprep.subr.mxu0 0.0
    %2023 = vmatpush1.msra.mxu0 0.0
    %2024 = vmatprep.subr.mxu0 0.0
    %2025 = vmatpush1.msra.mxu0 0.0
    %2026 = vmatprep.subr.mxu0 0.0
    %2027 = vmatpush1.msra.mxu0 0.0
    %2028 = vmatprep.subr.mxu0 0.0
    %2029 = vmatpush1.msra.mxu0 0.0
    %2030 = vmatprep.subr.mxu0 0.0
    %2031 = vmatpush1.msra.mxu0 0.0
    %2032 = vmatprep.subr.mxu0 0.0
    %2033 = vmatpush1.msra.mxu0 0.0
    %2034 = vmatprep.subr.mxu0 0.0
    %2035 = vmatpush1.msra.mxu0 0.0
    %2036 = vmatprep.subr.mxu0 0.0
    %2037 = vmatpush1.msra.mxu0 0.0
    %2038 = vmatprep.subr.mxu0 0.0
    %2039 = vmatpush1.msra.mxu0 0.0
    %2040 = vmatprep.subr.mxu0 0.0
    %2041 = vmatpush1.msra.mxu0 0.0
    %2042 = vmatprep.mubr.f32.mxu0 0.0
    %2043 = vmatmul.mubr.f32.gmra.mrb[0].mxu0 %v1955
    %v2044 = vpop.f32.mrb[0].mxu0
    %v2045 = vadd.f32 0.0, %v2044
    %v2046 = vpop.f32.mrb[0].mxu0
    %2047 = vmatprep.mubr.f32.mxu0 0.0
    %2048 = vmatmul.mubr.f32.gmra.mrb[0].mxu0 %v1958
    %v2049 = vpop.f32.mrb[0].mxu0
    %v2050 = vadd.f32 0.0, %v2049
    %v2051 = vpop.f32.mrb[0].mxu0
    %2052 = vmatprep.mubr.f32.mxu0 0.0
    %2053 = vmatmul.mubr.f32.gmra.mrb[0].mxu0 %v1961
    %v2054 = vpop.f32.mrb[0].mxu0
    %v2055 = vadd.f32 0.0, %v2054
    %v2056 = vpop.f32.mrb[0].mxu0
    %2057 = vmatprep.mubr.f32.mxu0 0.0
    %2058 = vmatmul.mubr.f32.gmra.mrb[0].mxu0 %v1964
    %v2059 = vpop.f32.mrb[0].mxu0
    %v2060 = vadd.f32 0.0, %v2059
    %v2061 = vpop.f32.mrb[0].mxu0
    %2062 = vmatprep.mubr.f32.mxu0 0.0
    %2063 = vmatmul.mubr.f32.gmra.mrb[0].mxu0 %v1967
    %v2064 = vpop.f32.mrb[0].mxu0
    %v2065 = vadd.f32 0.0, %v2064
    %v2066 = vpop.f32.mrb[0].mxu0
    %2067 = vmatprep.mubr.f32.mxu0 0.0
    %2068 = vmatmul.mubr.f32.gmra.mrb[0].mxu0 %v1970
    %v2069 = vpop.f32.mrb[0].mxu0
    %v2070 = vadd.f32 0.0, %v2069
    %v2071 = vpop.f32.mrb[0].mxu0
    %2072 = vmatprep.mubr.f32.mxu0 0.0
    %2073 = vmatmul.mubr.f32.gmra.mrb[0].mxu0 %v1973
    %v2074 = vpop.f32.mrb[0].mxu0
    %v2075 = vadd.f32 0.0, %v2074
    %v2076 = vpop.f32.mrb[0].mxu0
    %2077 = vmatprep.mubr.f32.mxu0 0.0
    %2078 = vmatmul.mubr.f32.gmra.mrb[0].mxu0 %v1976
    %v2079 = vpop.f32.mrb[0].mxu0
    %v2080 = vadd.f32 0.0, %v2079
    %v2081 = vpop.f32.mrb[0].mxu0
    %2082 = vdwg.mxu0
    %v2084 = vsel %vm252, %v1930, 0
    %v2087 = vsel %vm252, %v1931, 0
    %v2090 = vsel %vm252, %v1932, 0
    %v2093 = vsel %vm252, %v1933, 0
    %v2096 = vsel %vm252, %v1934, 0
    %v2099 = vsel %vm252, %v1935, 0
    %v2102 = vsel %vm252, %v1936, 0
    %v2105 = vsel %vm252, %v1937, 0
    %2107 = vmatprep.subr.mxu0 0.0
    %2108 = vmatpush1.msra.mxu0 %v1938
    %2109 = vmatprep.subr.mxu0 0.0
    %2110 = vmatpush1.msra.mxu0 %v1939
    %2111 = vmatprep.subr.mxu0 0.0
    %2112 = vmatpush1.msra.mxu0 %v1940
    %2113 = vmatprep.subr.mxu0 0.0
    %2114 = vmatpush1.msra.mxu0 %v1941
    %2115 = vmatprep.subr.mxu0 0.0
    %2116 = vmatpush1.msra.mxu0 0.0
    %2117 = vmatprep.subr.mxu0 0.0
    %2118 = vmatpush1.msra.mxu0 0.0
    %2119 = vmatprep.subr.mxu0 0.0
    %2120 = vmatpush1.msra.mxu0 0.0
    %2121 = vmatprep.subr.mxu0 0.0
    %2122 = vmatpush1.msra.mxu0 0.0
    %2123 = vmatprep.subr.mxu0 0.0
    %2124 = vmatpush1.msra.mxu0 0.0
    %2125 = vmatprep.subr.mxu0 0.0
    %2126 = vmatpush1.msra.mxu0 0.0
    %2127 = vmatprep.subr.mxu0 0.0
    %2128 = vmatpush1.msra.mxu0 0.0
    %2129 = vmatprep.subr.mxu0 0.0
    %2130 = vmatpush1.msra.mxu0 0.0
    %2131 = vmatprep.subr.mxu0 0.0
    %2132 = vmatpush1.msra.mxu0 0.0
    %2133 = vmatprep.subr.mxu0 0.0
    %2134 = vmatpush1.msra.mxu0 0.0
    %2135 = vmatprep.subr.mxu0 0.0
    %2136 = vmatpush1.msra.mxu0 0.0
    %2137 = vmatprep.subr.mxu0 0.0
    %2138 = vmatpush1.msra.mxu0 0.0
    %2139 = vmatprep.subr.mxu0 0.0
    %2140 = vmatpush1.msra.mxu0 0.0
    %2141 = vmatprep.subr.mxu0 0.0
    %2142 = vmatpush1.msra.mxu0 0.0
    %2143 = vmatprep.subr.mxu0 0.0
    %2144 = vmatpush1.msra.mxu0 0.0
    %2145 = vmatprep.subr.mxu0 0.0
    %2146 = vmatpush1.msra.mxu0 0.0
    %2147 = vmatprep.subr.mxu0 0.0
    %2148 = vmatpush1.msra.mxu0 0.0
    %2149 = vmatprep.subr.mxu0 0.0
    %2150 = vmatpush1.msra.mxu0 0.0
    %2151 = vmatprep.subr.mxu0 0.0
    %2152 = vmatpush1.msra.mxu0 0.0
    %2153 = vmatprep.subr.mxu0 0.0
    %2154 = vmatpush1.msra.mxu0 0.0
    %2155 = vmatprep.subr.mxu0 0.0
    %2156 = vmatpush1.msra.mxu0 0.0
    %2157 = vmatprep.subr.mxu0 0.0
    %2158 = vmatpush1.msra.mxu0 0.0
    %2159 = vmatprep.subr.mxu0 0.0
    %2160 = vmatpush1.msra.mxu0 0.0
    %2161 = vmatprep.subr.mxu0 0.0
    %2162 = vmatpush1.msra.mxu0 0.0
    %2163 = vmatprep.subr.mxu0 0.0
    %2164 = vmatpush1.msra.mxu0 0.0
    %2165 = vmatprep.subr.mxu0 0.0
    %2166 = vmatpush1.msra.mxu0 0.0
    %2167 = vmatprep.subr.mxu0 0.0
    %2168 = vmatpush1.msra.mxu0 0.0
    %2169 = vmatprep.subr.mxu0 0.0
    %2170 = vmatpush1.msra.mxu0 0.0
    %2171 = vmatprep.mubr.f32.mxu0 0.0
    %2172 = vmatmul.mubr.f32.gmra.mrb[0].mxu0 %v2084
    %v2173 = vpop.f32.mrb[0].mxu0
    %v2174 = vadd.f32 %v2045, %v2173
    %v2175 = vpop.f32.mrb[0].mxu0
    %2176 = vmatprep.mubr.f32.mxu0 0.0
    %2177 = vmatmul.mubr.f32.gmra.mrb[0].mxu0 %v2087
    %v2178 = vpop.f32.mrb[0].mxu0
    %v2179 = vadd.f32 %v2050, %v2178
    %v2180 = vpop.f32.mrb[0].mxu0
    %2181 = vmatprep.mubr.f32.mxu0 0.0
    %2182 = vmatmul.mubr.f32.gmra.mrb[0].mxu0 %v2090
    %v2183 = vpop.f32.mrb[0].mxu0
    %v2184 = vadd.f32 %v2055, %v2183
    %v2185 = vpop.f32.mrb[0].mxu0
    %2186 = vmatprep.mubr.f32.mxu0 0.0
    %2187 = vmatmul.mubr.f32.gmra.mrb[0].mxu0 %v2093
    %v2188 = vpop.f32.mrb[0].mxu0
    %v2189 = vadd.f32 %v2060, %v2188
    %v2190 = vpop.f32.mrb[0].mxu0
    %2191 = vmatprep.mubr.f32.mxu0 0.0
    %2192 = vmatmul.mubr.f32.gmra.mrb[0].mxu0 %v2096
    %v2193 = vpop.f32.mrb[0].mxu0
    %v2194 = vadd.f32 %v2065, %v2193
    %v2195 = vpop.f32.mrb[0].mxu0
    %2196 = vmatprep.mubr.f32.mxu0 0.0
    %2197 = vmatmul.mubr.f32.gmra.mrb[0].mxu0 %v2099
    %v2198 = vpop.f32.mrb[0].mxu0
    %v2199 = vadd.f32 %v2070, %v2198
    %v2200 = vpop.f32.mrb[0].mxu0
    %2201 = vmatprep.mubr.f32.mxu0 0.0
    %2202 = vmatmul.mubr.f32.gmra.mrb[0].mxu0 %v2102
    %v2203 = vpop.f32.mrb[0].mxu0
    %v2204 = vadd.f32 %v2075, %v2203
    %v2205 = vpop.f32.mrb[0].mxu0
    %2206 = vmatprep.mubr.f32.mxu0 0.0
    %2207 = vmatmul.mubr.f32.gmra.mrb[0].mxu0 %v2105
    %v2208 = vpop.f32.mrb[0].mxu0
    %v2209 = vadd.f32 %v2080, %v2208
    %v2210 = vpop.f32.mrb[0].mxu0
    %2211 = vdwg.mxu0
    %v2212 = vld [vmem:[%s7] sm:$0x1]
    %v2214 = vlaneseq
    %v2215 = vshrl.u32 %v2214, 7
    %v2216 = vsub.s32 0, %v2215
    %v2217 = vrot.slane %v2212, %v2216
    %v2219 = vadd.f32 %v2174, %v2217
    %v2220 = vadd.f32 %v2179, %v2217
    %v2221 = vadd.f32 %v2184, %v2217
    %v2222 = vadd.f32 %v2189, %v2217
    %v2223 = vadd.f32 %v2194, %v2217
    %v2224 = vadd.f32 %v2199, %v2217
    %v2225 = vadd.f32 %v2204, %v2217
    %v2226 = vadd.f32 %v2209, %v2217
    %2227 = vst [vmem:[#allocation10] sm:$0xff] %v2219
    %2228 = vst [vmem:[#allocation10 + $0x8] sm:$0xff] %v2220
    %2229 = vst [vmem:[#allocation10 + $0x10] sm:$0xff] %v2221
    %2230 = vst [vmem:[#allocation10 + $0x18] sm:$0xff] %v2222
    %2231 = vst [vmem:[#allocation10 + $0x20] sm:$0xff] %v2223
    %2232 = vst [vmem:[#allocation10 + $0x28] sm:$0xff] %v2224
    %2233 = vst [vmem:[#allocation10 + $0x30] sm:$0xff] %v2225
    %2234 = vst [vmem:[#allocation10 + $0x38] sm:$0xff] %v2226
    // Predicated region
    $region42: #{tpu_custom_call.1} parent=1 // pred_check
      _
    $region43: #{tpu_custom_call.1} parent=1 // pred_check_branch
      %2236 = sbr.rel (0) target = $region45
    $region44: #{tpu_custom_call.1} parent=1 // pred_region
      %s2238 = ssub.s32 1024, 1024
      %2239 = vsyncadd [#allocation7], %s2238
      %s2240 = sshll.u32 [#allocation10], 4
      %s2241 = int_to_ptr.vmem [resolvable:$true] %s2240
      %2246 = dma.vmem_to_hbm [thread:$0]  %s2241, 1024, %s8, [#allocation7], 128, 128, 8
    $region45: #{tpu_custom_call.1} parent=1 // pred_fallthru
      _
    // Predicated region
    $region46: #{tpu_custom_call.1} parent=1 // pred_check
      _
    $region47: #{tpu_custom_call.1} parent=1 // pred_check_branch
      %2248 = sbr.rel (0) target = $region49
    $region48: #{tpu_custom_call.1} parent=1 // pred_region
      %2249 = dma.done [#allocation7], 1024
    $region49: #{tpu_custom_call.1} parent=1 // pred_fallthru
      _
    %2250 = vsyncpa [#allocation6], 1
    %2251 = vsyncpa [#allocation9], 1
    %2252 = vsyncpa [#allocation7], 1

</llo_original>
